<compile_context>
chip_gen: v5e
topology: v5e:2x2
jax: 0.10.0
libtpu: 0.0.40
codegen_flags: <defaults>
</compile_context>

<pallas_src>
import functools

import jax
import jax.numpy as jnp
from jax import lax
from jax.experimental import pallas as pl
from jax.experimental.pallas import tpu as pltpu


# ----------------------------------------------------------------------------- fused kernel

def _fused_bottleneck_kernel(xs_ref, masks_ref, wmat_ref, aff_ref, o_ref, ya_ref, *,
                             b_blk, mx, mo, w_in4, w_b, w_out, w_se_p, inv_hw, taps):
    """One block of b_blk images per grid step.
      xs:    (b_blk*mx, 4*w_in)  bf16  space-to-depth(+pad) input rows, mx = BH*BW per image
      masks: (mx+mo, 4*w_b)      bf16  rows [0,mx): stage-a validity mask (0/1);
                                       rows [mx,mx+mo), cols [0,w_b): SE-pool column mask
      wmat:  (R, AW)             bf16  packed weights (block-diag 'a', 4 tap blocks, 'c', SE)
      aff:   (8, AW)             f32   packed folded-BN affines and SE biases
      o:     (b_blk*mo, w_out)   bf16  output rows on the (Ho, BW) padded grid per image
      ya_ref:(b_blk, mx, 4*w_b)  bf16  VMEM scratch holding the stage-a output
    """
    w_b4 = 4 * w_b
    r_wd = w_in4                    # 4 per-tap grouped-3x3 blocks, each (4*w_b, w_b)
    r_wc = r_wd + 4 * w_b4          # 1x1 'c' weight  (w_b, w_out)
    r_w1 = r_wc + w_b               # SE fc1          (w_b, w_se_p)
    r_w2 = r_w1 + w_b               # SE fc2          (w_se_p, w_b)

    # ---- a: 1x1 conv + BN + ReLU over all images x all 4 stride-2 subpositions ------------
    ya = jnp.dot(xs_ref[...], wmat_ref[0:w_in4, 0:w_b4],
                 preferred_element_type=jnp.float32)                   # (b_blk*mx, 4*w_b)
    ya = jnp.maximum(ya * aff_ref[0:1, 0:w_b4] + aff_ref[1:2, 0:w_b4], 0.0)
    amask = masks_ref[0:mx, :].astype(jnp.float32)                     # (mx, 4*w_b) 0/1
    ya3 = ya.reshape(b_blk, mx, w_b4) * amask[None]                    # zero pad/grid-ext rows
    ya_ref[...] = ya3.astype(jnp.bfloat16)                             # single f32->bf16 cast

    # ---- b: grouped 3x3 stride-2 conv = 4 shifted-row MXU accumulations, + BN + ReLU ------
    acc = jnp.zeros((b_blk * mo, w_b), jnp.float32)
    for t, s in enumerate(taps):                                       # static unroll (4 taps)
        tap = ya_ref[:, pl.ds(s, mo), :].reshape(b_blk * mo, w_b4)     # bf16, no per-tap cast
        acc = acc + jnp.dot(tap, wmat_ref[r_wd + t * w_b4:r_wd + (t + 1) * w_b4, 0:w_b],
                            preferred_element_type=jnp.float32)
    yb = jnp.maximum(acc * aff_ref[2:3, 0:w_b] + aff_ref[3:4, 0:w_b], 0.0)  # (b_blk*mo, w_b)

    # ---- SE: per-image masked global-average pool + 2 small FCs + sigmoid gate ------------
    yb3 = yb.reshape(b_blk, mo, w_b)
    pmask = masks_ref[mx:mx + mo, 0:w_b].astype(jnp.float32)           # (mo, w_b) 0/1
    pooled = jnp.sum(yb3 * (pmask * inv_hw)[None], axis=1)             # (b_blk, w_b)
    h = jnp.maximum(
        jnp.dot(pooled.astype(jnp.bfloat16), wmat_ref[r_w1:r_w1 + w_b, 0:w_se_p],
                preferred_element_type=jnp.float32) + aff_ref[6:7, 0:w_se_p], 0.0)
    z = jnp.dot(h.astype(jnp.bfloat16), wmat_ref[r_w2:r_w2 + w_se_p, 0:w_b],
                preferred_element_type=jnp.float32) + aff_ref[7:8, 0:w_b]
    gate = jax.nn.sigmoid(z)                                           # (b_blk, w_b)
    ys = (yb3 * gate[:, None, :]).reshape(b_blk * mo, w_b)

    # ---- c: 1x1 conv + BN (final BN, no ReLU), bf16 writeback ------------------------------
    yc = jnp.dot(ys.astype(jnp.bfloat16), wmat_ref[r_wc:r_wc + w_b, 0:w_out],
                 preferred_element_type=jnp.float32)
    o_ref[...] = (yc * aff_ref[4:5, 0:w_out] + aff_ref[5:6, 0:w_out]).astype(o_ref.dtype)


# ----------------------------------------------------------------------------- host helpers

def _space_to_depth_ext(a, bh_ext, bw_ext):
    """Stride-2 space-to-depth of (N, 2*bh, 2*bw, C), zero-extended to a (bh_ext, bw_ext)
    block grid and flattened to rows: -> (N, bh_ext*bw_ext, 4*C).
    Channel layout: (row_parity*2 + col_parity)*C + c."""
    n, hp, wp, c = a.shape
    bh, bw = hp // 2, wp // 2
    s = a.reshape(n, bh, 2, bw, 2, c)
    s = jnp.transpose(s, (0, 1, 3, 2, 4, 5)).reshape(n, bh, bw, 4 * c)
    s = jnp.pad(s, ((0, 0), (0, bh_ext - bh), (0, bw_ext - bw), (0, 0)))
    return s.reshape(n, bh_ext * bw_ext, 4 * c)


def _pack_tap_weights(b_w, w_b, gw):
    """(G, 9*gw, co) grouped 3x3 weights -> (4, 4*w_b, w_b) per-block-offset tap weights
    (block-diagonal over groups; zero rows for subpositions a tap never reads)."""
    num_g = w_b // gw
    co = w_b // num_g
    w3 = jnp.zeros((3, 3, w_b, w_b), jnp.float32)
    for g in range(num_g):
        w3 = w3.at[:, :, g * gw:(g + 1) * gw, g * co:(g + 1) * co].set(
            b_w[g].reshape(3, 3, gw, co))
    wd = jnp.zeros((4, 4 * w_b, w_b), jnp.float32)
    for dbh in range(2):
        for dbw in range(2):
            for sr in range(2):
                kh = 2 * dbh + sr
                if kh > 2:
                    continue
                for sc in range(2):
                    kw = 2 * dbw + sc
                    if kw > 2:
                        continue
                    sub = sr * 2 + sc
                    wd = wd.at[dbh * 2 + dbw, sub * w_b:(sub + 1) * w_b, :].set(w3[kh, kw])
    return wd


# ----------------------------------------------------------------------------- forward

def bottleneck_transform_forward(x_nchw, params, stride, gw):
    if stride != 2:
        # TODO(synk): fused kernel is specialized to stride=2 (space-to-depth); stride=1 would
        # use 9 unit row-shifts instead of 4 block-offset taps.
        raise NotImplementedError("fused BottleneckTransform kernel requires stride == 2")
    x = jnp.transpose(x_nchw, (0, 2, 3, 1)).astype(jnp.float32)          # NHWC
    n, h, w, w_in = x.shape
    assert h % 2 == 0 and w % 2 == 0
    w_b = params["a_w"].shape[1]
    w_out = params["c_w"].shape[1]
    w_se = params["se_w1"].shape[1]
    w_se_p = max(8, w_se)                      # pad SE width so no matmul dim degenerates

    ho, wo = h // 2, w // 2
    bw_ext = max(8, -(-(wo + 1) // 8) * 8)     # padded block-grid width (mult of 8, >= Wo+1)
    bh_ext = ho + 2                            # padded block-grid height
    mx, mo = bh_ext * bw_ext, ho * bw_ext
    # layout invariants the in-kernel shifted-tap reads and reshapes rely on
    assert bw_ext >= wo + 1 and bh_ext >= ho + 2
    assert mx % 8 == 0 and mo % 8 == 0

    # ---- batch block folded into the matmul M dimension ------------------------------------
    b_blk = min(8, n)
    n_pad = -(-n // b_blk) * b_blk
    n_blocks = n_pad // b_blk

    # ---- host glue: 1:1 space-to-depth of the zero-padded input, flattened to matmul rows --
    xp = jnp.pad(x, ((0, n_pad - n), (1, 1), (1, 1), (0, 0)))
    xs = _space_to_depth_ext(xp, bh_ext, bw_ext).reshape(n_pad * mx, 4 * w_in)
    xs = xs.astype(jnp.bfloat16)

    # ---- host glue: 0/1 masks coalesced into one bf16 operand -------------------------------
    ones = jnp.pad(jnp.ones((1, h, w, 1), jnp.float32), ((0, 0), (1, 1), (1, 1), (0, 0)))
    amask = jnp.repeat(_space_to_depth_ext(ones, bh_ext, bw_ext)[0], w_b, axis=1)  # (mx,4*w_b)
    col_valid = (jnp.arange(bw_ext) < wo).astype(jnp.float32)
    pmask = jnp.tile(col_valid, (ho,))[:, None] * jnp.ones((1, w_b), jnp.float32)  # (mo, w_b)
    pmask = jnp.pad(pmask, ((0, 0), (0, 4 * w_b - w_b)))
    masks = jnp.concatenate([amask, pmask], axis=0).astype(jnp.bfloat16)

    # ---- host glue: packed bf16 weight slab --------------------------------------------------
    w_b4, w_in4 = 4 * w_b, 4 * w_in
    aw = max(w_b4, w_out, w_se_p)
    rows = w_in4 + 4 * w_b4 + w_b + w_b + w_se_p
    wmat = jnp.zeros((-(-rows // 8) * 8, aw), jnp.float32)
    wa_blk = jnp.kron(jnp.eye(4, dtype=jnp.float32), params["a_w"])      # block-diag 'a'
    wd = _pack_tap_weights(params["b_w"], w_b, gw)
    r = 0
    wmat = wmat.at[r:r + w_in4, :w_b4].set(wa_blk); r += w_in4
    for t in range(4):
        wmat = wmat.at[r:r + w_b4, :w_b].set(wd[t]); r += w_b4
    wmat = wmat.at[r:r + w_b, :w_out].set(params["c_w"]); r += w_b
    wmat = wmat.at[r:r + w_b, :w_se].set(params["se_w1"]); r += w_b
    wmat = wmat.at[r:r + w_se, :w_b].set(params["se_w2"])
    wmat = wmat.astype(jnp.bfloat16)

    # ---- host glue: packed f32 affine/bias slab ---------------------------------------------
    aff = jnp.zeros((8, aw), jnp.float32)
    aff = aff.at[0, :w_b4].set(jnp.tile(params["a_scale"], 4))
    aff = aff.at[1, :w_b4].set(jnp.tile(params["a_bias"], 4))
    aff = aff.at[2, :w_b].set(params["b_scale"])
    aff = aff.at[3, :w_b].set(params["b_bias"])
    aff = aff.at[4, :w_out].set(params["c_scale"])
    aff = aff.at[5, :w_out].set(params["c_bias"])
    aff = aff.at[6, :w_se].set(params["se_b1"])
    aff = aff.at[7, :w_b].set(params["se_b2"])

    kern = functools.partial(
        _fused_bottleneck_kernel, b_blk=b_blk, mx=mx, mo=mo, w_in4=w_in4, w_b=w_b,
        w_out=w_out, w_se_p=w_se_p, inv_hw=1.0 / float(ho * wo),
        taps=(0, 1, bw_ext, bw_ext + 1))
    rep = lambda i: (0, 0)   # noqa: E731  weights/masks/affines: same block every grid step

    out = pl.pallas_call(
        kern,
        out_shape=jax.ShapeDtypeStruct((n_pad * mo, w_out), jnp.bfloat16),
        grid=(n_blocks,),
        in_specs=[
            pl.BlockSpec((b_blk * mx, w_in4), lambda i: (i, 0)),         # xs (per batch block)
            pl.BlockSpec(masks.shape, rep),                              # masks
            pl.BlockSpec(wmat.shape, rep),                               # packed weights
            pl.BlockSpec(aff.shape, rep),                                # packed affines/biases
        ],
        out_specs=pl.BlockSpec((b_blk * mo, w_out), lambda i: (i, 0)),
        scratch_shapes=[pltpu.VMEM((b_blk, mx, w_b4), jnp.bfloat16)],
        compiler_params=pltpu.CompilerParams(dimension_semantics=("parallel",)),
    )(xs, masks, wmat, aff)

    y = out.astype(jnp.float32).reshape(n_pad, ho, bw_ext, w_out)[:n, :, :wo, :]
    return jnp.transpose(y, (0, 3, 1, 2))                                # back to NCHW


# ----------------------------------------------------------------------------- reference

def reference_forward(x_nchw, params, stride, gw):
    x = jnp.transpose(x_nchw, (0, 2, 3, 1)).astype(jnp.float32)
    dn = ("NHWC", "HWIO", "NHWC")
    # a
    y = lax.conv_general_dilated(x, params["a_w"][None, None], (1, 1), "VALID",
                                 dimension_numbers=dn)
    y = jnp.maximum(y * params["a_scale"] + params["a_bias"], 0.0)
    # b (grouped)
    w_b = params["a_w"].shape[1]
    G = w_b // gw
    co = w_b // G
    wb = params["b_w"].reshape(G, 3, 3, gw, co)
    wb = jnp.transpose(wb, (1, 2, 3, 0, 4)).reshape(3, 3, gw, G * co)
    y = lax.conv_general_dilated(y, wb, (stride, stride), ((1, 1), (1, 1)),
                                 dimension_numbers=dn, feature_group_count=G)
    y = jnp.maximum(y * params["b_scale"] + params["b_bias"], 0.0)
    # se
    pooled = y.mean(axis=(1, 2))
    h = jnp.maximum(pooled @ params["se_w1"] + params["se_b1"], 0.0)
    s = jax.nn.sigmoid(h @ params["se_w2"] + params["se_b2"])
    y = y * s[:, None, None, :]
    # c
    y = lax.conv_general_dilated(y, params["c_w"][None, None], (1, 1), "VALID",
                                 dimension_numbers=dn)
    y = y * params["c_scale"] + params["c_bias"]
    return jnp.transpose(y, (0, 3, 1, 2))


# ----------------------------------------------------------------------------- setup

def fold_bn(gamma, beta, mean, var, eps=1e-5):
    scale = gamma / jnp.sqrt(var + eps)
    return scale, beta - mean * scale


def make_params(key, w_in, w_out, bm, gw, se_r):
    w_b = int(round(w_out * bm))
    num_gs = w_b // gw
    co = w_b // num_gs
    w_se = int(round(w_in * se_r))
    ks = jax.random.split(key, 8)

    def bn(c, off):
        gamma = 1.0 + 0.05 * jnp.cos(jnp.arange(c, dtype=jnp.float32) + off)
        beta = 0.05 * jnp.sin(jnp.arange(c, dtype=jnp.float32) + off)
        mean = 0.02 * jnp.arange(c, dtype=jnp.float32)
        var = jnp.linspace(0.5, 1.5, c, dtype=jnp.float32)
        return fold_bn(gamma, beta, mean, var)

    a_scale, a_bias = bn(w_b, 0.0)
    b_scale, b_bias = bn(w_b, 1.0)
    c_scale, c_bias = bn(w_out, 2.0)
    return {
        "a_w": 0.1 * jax.random.normal(ks[0], (w_in, w_b), jnp.float32),
        "a_scale": a_scale, "a_bias": a_bias,
        # grouped 3x3 weights in per-group matmul layout: (G, 3*3*gw, co)
        "b_w": 0.1 * jax.random.normal(ks[1], (num_gs, 9 * gw, co), jnp.float32),
        "b_scale": b_scale, "b_bias": b_bias,
        "se_w1": 0.1 * jax.random.normal(ks[2], (w_b, w_se), jnp.float32),
        "se_b1": 0.01 * jnp.arange(w_se, dtype=jnp.float32),
        "se_w2": 0.1 * jax.random.normal(ks[3], (w_se, w_b), jnp.float32),
        "se_b2": 0.01 * jnp.arange(w_b, dtype=jnp.float32),
        "c_w": 0.1 * jax.random.normal(ks[4], (w_b, w_out), jnp.float32),
        "c_scale": c_scale, "c_bias": c_bias,
    }


if __name__ == "__main__":
    # BottleneckTransform(w_in=8, w_out=16, stride=2, bn_norm='BN', bm=1.0, gw=8, se_r=0.25)
    w_in, w_out, stride, bm, gw, se_r = 8, 16, 2, 1.0, 8, 0.25

    key = jax.random.PRNGKey(0)
    kx, kp = jax.random.split(key)
    x = jax.random.normal(kx, (2, w_in, 16, 16), jnp.float32)   # NCHW, like the torch module
    params = make_params(kp, w_in, w_out, bm, gw, se_r)

    fwd = jax.jit(bottleneck_transform_forward, static_argnums=(2, 3))
    out = jax.block_until_ready(fwd(x, params, stride, gw))
    ref = jax.block_until_ready(reference_forward(x, params, stride, gw))

    assert out.shape == ref.shape == (2, w_out, 8, 8), out.shape
    max_err = float(jnp.max(jnp.abs(out - ref)))
    # bf16 MXU inputs / bf16 writeback with f32 accumulation -> bf16-appropriate tolerance.
    assert jnp.allclose(out, ref, rtol=5e-2, atol=5e-2), max_err
    print("KERNEL_OK")
</pallas_src>

<mosaic_0001>
module attributes {stable_mosaic.version = 11 : i64} {
  func.func @_fused_bottleneck_kernel(%arg0: i32, %arg1: memref<320x32xbf16, #tpu.memory_space<vmem>>, %arg2: memref<288x64xbf16, #tpu.memory_space<vmem>>, %arg3: memref<328x64xbf16, #tpu.memory_space<vmem>>, %arg4: memref<8x64xf32, #tpu.memory_space<vmem>>, %arg5: memref<256x16xbf16, #tpu.memory_space<vmem>>, %arg6: memref<2x160x64xbf16, #tpu.memory_space<vmem>>) attributes {dimension_semantics = [#tpu.dimension_semantics<parallel>], iteration_bounds = array<i64: 1>, scalar_prefetch = 0 : i64, scratch_operands = 1 : i64, tpu.core_type = #tpu.core_type<tc>, window_params = [{transform_indices = @transform_0, window_bounds = array<i64: 320, 32>}, {pipeline_mode = #tpu.pipeline_mode<synchronous>, transform_indices = @transform_1, window_bounds = array<i64: 288, 64>}, {pipeline_mode = #tpu.pipeline_mode<synchronous>, transform_indices = @transform_2, window_bounds = array<i64: 328, 64>}, {pipeline_mode = #tpu.pipeline_mode<synchronous>, transform_indices = @transform_3, window_bounds = array<i64: 8, 64>}, {transform_indices = @transform_4, window_bounds = array<i64: 256, 16>}]} {
    %c0 = arith.constant 0 : index
    %c0_0 = arith.constant 0 : index
    %0 = vector.load %arg1[%c0, %c0_0] : memref<320x32xbf16, #tpu.memory_space<vmem>>, vector<320x32xbf16>
    %c0_1 = arith.constant 0 : index
    %c0_2 = arith.constant 0 : index
    %1 = vector.load %arg3[%c0_1, %c0_2] : memref<328x64xbf16, #tpu.memory_space<vmem>>, vector<32x64xbf16>
    %cst = arith.constant dense<0.000000e+00> : vector<320x64xf32>
    %2 = tpu.matmul %0, %1, %cst {dimension_numbers = #tpu.dot_dimension_numbers<[1], [0], [0], [1], [0, 0, 1, 1], [], []>} : vector<320x32xbf16>, vector<32x64xbf16>, vector<320x64xf32> -> vector<320x64xf32>
    %c0_3 = arith.constant 0 : index
    %c0_4 = arith.constant 0 : index
    %3 = vector.load %arg4[%c0_3, %c0_4] : memref<8x64xf32, #tpu.memory_space<vmem>>, vector<1x64xf32>
    %4 = vector.broadcast %3 : vector<1x64xf32> to vector<320x64xf32>
    %5 = arith.mulf %2, %4 : vector<320x64xf32>
    %c1 = arith.constant 1 : index
    %c0_5 = arith.constant 0 : index
    %6 = vector.load %arg4[%c1, %c0_5] : memref<8x64xf32, #tpu.memory_space<vmem>>, vector<1x64xf32>
    %7 = vector.broadcast %6 : vector<1x64xf32> to vector<320x64xf32>
    %8 = arith.addf %5, %7 : vector<320x64xf32>
    %cst_6 = arith.constant 0.000000e+00 : f32
    %9 = vector.broadcast %cst_6 : f32 to vector<320x64xf32>
    %10 = arith.maximumf %8, %9 : vector<320x64xf32>
    %c0_7 = arith.constant 0 : index
    %c0_8 = arith.constant 0 : index
    %11 = vector.load %arg2[%c0_7, %c0_8] : memref<288x64xbf16, #tpu.memory_space<vmem>>, vector<160x64xbf16>
    %12 = arith.extf %11 : vector<160x64xbf16> to vector<160x64xf32>
    %13 = vector.shape_cast %10 : vector<320x64xf32> to vector<2x160x64xf32>
    %14 = vector.shape_cast %12 : vector<160x64xf32> to vector<1x160x64xf32>
    %15 = vector.broadcast %14 : vector<1x160x64xf32> to vector<2x160x64xf32>
    %16 = arith.mulf %13, %15 : vector<2x160x64xf32>
    %17 = arith.truncf %16 : vector<2x160x64xf32> to vector<2x160x64xbf16>
    %c0_9 = arith.constant 0 : index
    %c0_10 = arith.constant 0 : index
    %c0_11 = arith.constant 0 : index
    %18 = vector.load %arg6[%c0_9, %c0_10, %c0_11] : memref<2x160x64xbf16, #tpu.memory_space<vmem>>, vector<2x160x64xbf16>
    tpu.vector_store %arg6[%c0_9, %c0_10, %c0_11], %17 {strides = array<i32>} : memref<2x160x64xbf16, #tpu.memory_space<vmem>>, vector<2x160x64xbf16>,
    %cst_12 = arith.constant 0.000000e+00 : f32
    %19 = vector.broadcast %cst_12 : f32 to vector<256x16xf32>
    %c0_13 = arith.constant 0 : index
    %c0_14 = arith.constant 0 : index
    %c0_15 = arith.constant 0 : index
    %20 = vector.load %arg6[%c0_13, %c0_14, %c0_15] : memref<2x160x64xbf16, #tpu.memory_space<vmem>>, vector<2x128x64xbf16>
    %21 = vector.shape_cast %20 : vector<2x128x64xbf16> to vector<256x64xbf16>
    %c32 = arith.constant 32 : index
    %c0_16 = arith.constant 0 : index
    %22 = vector.load %arg3[%c32, %c0_16] : memref<328x64xbf16, #tpu.memory_space<vmem>>, vector<64x16xbf16>
    %cst_17 = arith.constant dense<0.000000e+00> : vector<256x16xf32>
    %23 = tpu.matmul %21, %22, %cst_17 {dimension_numbers = #tpu.dot_dimension_numbers<[1], [0], [0], [1], [0, 0, 1, 1], [], []>} : vector<256x64xbf16>, vector<64x16xbf16>, vector<256x16xf32> -> vector<256x16xf32>
    %24 = arith.addf %19, %23 : vector<256x16xf32>
    %c0_18 = arith.constant 0 : index
    %c1_19 = arith.constant 1 : index
    %c0_20 = arith.constant 0 : index
    %25 = vector.load %arg6[%c0_18, %c1_19, %c0_20] : memref<2x160x64xbf16, #tpu.memory_space<vmem>>, vector<2x128x64xbf16>
    %26 = vector.shape_cast %25 : vector<2x128x64xbf16> to vector<256x64xbf16>
    %c96 = arith.constant 96 : index
    %c0_21 = arith.constant 0 : index
    %27 = vector.load %arg3[%c96, %c0_21] : memref<328x64xbf16, #tpu.memory_space<vmem>>, vector<64x16xbf16>
    %cst_22 = arith.constant dense<0.000000e+00> : vector<256x16xf32>
    %28 = tpu.matmul %26, %27, %cst_22 {dimension_numbers = #tpu.dot_dimension_numbers<[1], [0], [0], [1], [0, 0, 1, 1], [], []>} : vector<256x64xbf16>, vector<64x16xbf16>, vector<256x16xf32> -> vector<256x16xf32>
    %29 = arith.addf %24, %28 : vector<256x16xf32>
    %c0_23 = arith.constant 0 : index
    %c16 = arith.constant 16 : index
    %c0_24 = arith.constant 0 : index
    %30 = vector.load %arg6[%c0_23, %c16, %c0_24] : memref<2x160x64xbf16, #tpu.memory_space<vmem>>, vector<2x128x64xbf16>
    %31 = vector.shape_cast %30 : vector<2x128x64xbf16> to vector<256x64xbf16>
    %c160 = arith.constant 160 : index
    %c0_25 = arith.constant 0 : index
    %32 = vector.load %arg3[%c160, %c0_25] : memref<328x64xbf16, #tpu.memory_space<vmem>>, vector<64x16xbf16>
    %cst_26 = arith.constant dense<0.000000e+00> : vector<256x16xf32>
    %33 = tpu.matmul %31, %32, %cst_26 {dimension_numbers = #tpu.dot_dimension_numbers<[1], [0], [0], [1], [0, 0, 1, 1], [], []>} : vector<256x64xbf16>, vector<64x16xbf16>, vector<256x16xf32> -> vector<256x16xf32>
    %34 = arith.addf %29, %33 : vector<256x16xf32>
    %c0_27 = arith.constant 0 : index
    %c17 = arith.constant 17 : index
    %c0_28 = arith.constant 0 : index
    %35 = vector.load %arg6[%c0_27, %c17, %c0_28] : memref<2x160x64xbf16, #tpu.memory_space<vmem>>, vector<2x128x64xbf16>
    %36 = vector.shape_cast %35 : vector<2x128x64xbf16> to vector<256x64xbf16>
    %c224 = arith.constant 224 : index
    %c0_29 = arith.constant 0 : index
    %37 = vector.load %arg3[%c224, %c0_29] : memref<328x64xbf16, #tpu.memory_space<vmem>>, vector<64x16xbf16>
    %cst_30 = arith.constant dense<0.000000e+00> : vector<256x16xf32>
    %38 = tpu.matmul %36, %37, %cst_30 {dimension_numbers = #tpu.dot_dimension_numbers<[1], [0], [0], [1], [0, 0, 1, 1], [], []>} : vector<256x64xbf16>, vector<64x16xbf16>, vector<256x16xf32> -> vector<256x16xf32>
    %39 = arith.addf %34, %38 : vector<256x16xf32>
    %c2 = arith.constant 2 : index
    %c0_31 = arith.constant 0 : index
    %40 = vector.load %arg4[%c2, %c0_31] : memref<8x64xf32, #tpu.memory_space<vmem>>, vector<1x16xf32>
    %41 = vector.broadcast %40 : vector<1x16xf32> to vector<256x16xf32>
    %42 = arith.mulf %39, %41 : vector<256x16xf32>
    %c3 = arith.constant 3 : index
    %c0_32 = arith.constant 0 : index
    %43 = vector.load %arg4[%c3, %c0_32] : memref<8x64xf32, #tpu.memory_space<vmem>>, vector<1x16xf32>
    %44 = vector.broadcast %43 : vector<1x16xf32> to vector<256x16xf32>
    %45 = arith.addf %42, %44 : vector<256x16xf32>
    %cst_33 = arith.constant 0.000000e+00 : f32
    %46 = vector.broadcast %cst_33 : f32 to vector<256x16xf32>
    %47 = arith.maximumf %45, %46 : vector<256x16xf32>
    %48 = vector.shape_cast %47 : vector<256x16xf32> to vector<2x128x16xf32>
    %c160_34 = arith.constant 160 : index
    %c0_35 = arith.constant 0 : index
    %49 = vector.load %arg2[%c160_34, %c0_35] : memref<288x64xbf16, #tpu.memory_space<vmem>>, vector<128x16xbf16>
    %50 = arith.extf %49 : vector<128x16xbf16> to vector<128x16xf32>
    %cst_36 = arith.constant 1.562500e-02 : f32
    %51 = vector.broadcast %cst_36 : f32 to vector<128x16xf32>
    %52 = arith.mulf %50, %51 : vector<128x16xf32>
    %53 = vector.shape_cast %52 : vector<128x16xf32> to vector<1x128x16xf32>
    %54 = vector.broadcast %53 : vector<1x128x16xf32> to vector<2x128x16xf32>
    %55 = arith.mulf %48, %54 : vector<2x128x16xf32>
    %cst_37 = arith.constant dense<0.000000e+00> : vector<2x16xf32>
    %56 = vector.multi_reduction <add>, %55, %cst_37 [1] : vector<2x128x16xf32> to vector<2x16xf32>
    %57 = arith.truncf %56 : vector<2x16xf32> to vector<2x16xbf16>
    %c304 = arith.constant 304 : index
    %c0_38 = arith.constant 0 : index
    %58 = vector.load %arg3[%c304, %c0_38] : memref<328x64xbf16, #tpu.memory_space<vmem>>, vector<16x8xbf16>
    %cst_39 = arith.constant dense<0.000000e+00> : vector<2x8xf32>
    %59 = tpu.matmul %57, %58, %cst_39 {dimension_numbers = #tpu.dot_dimension_numbers<[1], [0], [0], [1], [0, 0, 1, 1], [], []>} : vector<2x16xbf16>, vector<16x8xbf16>, vector<2x8xf32> -> vector<2x8xf32>
    %c6 = arith.constant 6 : index
    %c0_40 = arith.constant 0 : index
    %60 = vector.load %arg4[%c6, %c0_40] : memref<8x64xf32, #tpu.memory_space<vmem>>, vector<1x8xf32>
    %61 = vector.broadcast %60 : vector<1x8xf32> to vector<2x8xf32>
    %62 = arith.addf %59, %61 : vector<2x8xf32>
    %cst_41 = arith.constant 0.000000e+00 : f32
    %63 = vector.broadcast %cst_41 : f32 to vector<2x8xf32>
    %64 = arith.maximumf %62, %63 : vector<2x8xf32>
    %65 = arith.truncf %64 : vector<2x8xf32> to vector<2x8xbf16>
    %c320 = arith.constant 320 : index
    %c0_42 = arith.constant 0 : index
    %66 = vector.load %arg3[%c320, %c0_42] : memref<328x64xbf16, #tpu.memory_space<vmem>>, vector<8x16xbf16>
    %cst_43 = arith.constant dense<0.000000e+00> : vector<2x16xf32>
    %67 = tpu.matmul %65, %66, %cst_43 {dimension_numbers = #tpu.dot_dimension_numbers<[1], [0], [0], [1], [0, 0, 1, 1], [], []>} : vector<2x8xbf16>, vector<8x16xbf16>, vector<2x16xf32> -> vector<2x16xf32>
    %c7 = arith.constant 7 : index
    %c0_44 = arith.constant 0 : index
    %68 = vector.load %arg4[%c7, %c0_44] : memref<8x64xf32, #tpu.memory_space<vmem>>, vector<1x16xf32>
    %69 = vector.broadcast %68 : vector<1x16xf32> to vector<2x16xf32>
    %70 = arith.addf %67, %69 : vector<2x16xf32>
    %71 = arith.negf %70 : vector<2x16xf32>
    %72 = math.exp %71 : vector<2x16xf32>
    %cst_45 = arith.constant 1.000000e+00 : f32
    %73 = vector.broadcast %cst_45 : f32 to vector<2x16xf32>
    %74 = arith.addf %73, %72 : vector<2x16xf32>
    %75 = arith.divf %73, %74 : vector<2x16xf32>
    %76 = vector.shape_cast %75 : vector<2x16xf32> to vector<2x1x16xf32>
    %77 = vector.broadcast %76 : vector<2x1x16xf32> to vector<2x128x16xf32>
    %78 = arith.mulf %48, %77 : vector<2x128x16xf32>
    %79 = vector.shape_cast %78 : vector<2x128x16xf32> to vector<256x16xf32>
    %80 = arith.truncf %79 : vector<256x16xf32> to vector<256x16xbf16>
    %c288 = arith.constant 288 : index
    %c0_46 = arith.constant 0 : index
    %81 = vector.load %arg3[%c288, %c0_46] : memref<328x64xbf16, #tpu.memory_space<vmem>>, vector<16x16xbf16>
    %cst_47 = arith.constant dense<0.000000e+00> : vector<256x16xf32>
    %82 = tpu.matmul %80, %81, %cst_47 {dimension_numbers = #tpu.dot_dimension_numbers<[1], [0], [0], [1], [0, 0, 1, 1], [], []>} : vector<256x16xbf16>, vector<16x16xbf16>, vector<256x16xf32> -> vector<256x16xf32>
    %c4 = arith.constant 4 : index
    %c0_48 = arith.constant 0 : index
    %83 = vector.load %arg4[%c4, %c0_48] : memref<8x64xf32, #tpu.memory_space<vmem>>, vector<1x16xf32>
    %84 = vector.broadcast %83 : vector<1x16xf32> to vector<256x16xf32>
    %85 = arith.mulf %82, %84 : vector<256x16xf32>
    %c5 = arith.constant 5 : index
    %c0_49 = arith.constant 0 : index
    %86 = vector.load %arg4[%c5, %c0_49] : memref<8x64xf32, #tpu.memory_space<vmem>>, vector<1x16xf32>
    %87 = vector.broadcast %86 : vector<1x16xf32> to vector<256x16xf32>
    %88 = arith.addf %85, %87 : vector<256x16xf32>
    %89 = arith.truncf %88 : vector<256x16xf32> to vector<256x16xbf16>
    %c0_50 = arith.constant 0 : index
    %c0_51 = arith.constant 0 : index
    %90 = vector.load %arg5[%c0_50, %c0_51] : memref<256x16xbf16, #tpu.memory_space<vmem>>, vector<256x16xbf16>
    tpu.vector_store %arg5[%c0_50, %c0_51], %89 {strides = array<i32>} : memref<256x16xbf16, #tpu.memory_space<vmem>>, vector<256x16xbf16>,
    return
  }
  func.func @transform_0(%arg0: i32) -> (i32, i32) {
    %c0_i32 = arith.constant 0 : i32
    %c0_i32_0 = arith.constant 0 : i32
    return %arg0, %c0_i32 : i32, i32
  }
  func.func @transform_1(%arg0: i32) -> (i32, i32) {
    %c0_i32 = arith.constant 0 : i32
    %c0_i32_0 = arith.constant 0 : i32
    %c0_i32_1 = arith.constant 0 : i32
    return %c0_i32, %c0_i32_0 : i32, i32
  }
  func.func @transform_2(%arg0: i32) -> (i32, i32) {
    %c0_i32 = arith.constant 0 : i32
    %c0_i32_0 = arith.constant 0 : i32
    %c0_i32_1 = arith.constant 0 : i32
    return %c0_i32, %c0_i32_0 : i32, i32
  }
  func.func @transform_3(%arg0: i32) -> (i32, i32) {
    %c0_i32 = arith.constant 0 : i32
    %c0_i32_0 = arith.constant 0 : i32
    %c0_i32_1 = arith.constant 0 : i32
    return %c0_i32, %c0_i32_0 : i32, i32
  }
  func.func @transform_4(%arg0: i32) -> (i32, i32) {
    %c0_i32 = arith.constant 0 : i32
    %c0_i32_0 = arith.constant 0 : i32
    return %arg0, %c0_i32 : i32, i32
  }
}

</mosaic_0001>

<llo_original>
// kernel: tile.23
$region0: #{tile.23}
  #allocation0 [shape = 's32[1]{0}', space=sflag, size = 0x4, scoped, tag = 'scoped memory for tile.23']
  %s0 = inlined_call_operand.vmem [shape: f32[16], index: 0, kind: input, shape index: {}]
  %s1 = inlined_call_operand.vmem [shape: f32[4,16], index: 1, kind: output, shape index: {}]
  // Predicated region
  $region2: #{tile.23} parent=0 // pred_check
    _
  $region3: #{tile.23} parent=0 // pred_check_branch
    %3 = sbr.rel (0) target = $region5
  $region4: #{tile.23} parent=0 // pred_region
    _
  $region5: #{tile.23} parent=0 // pred_fallthru
    _
  %v4 = vld [vmem:[%s0] ss:$0 sm:$0xff]
  %5 = vst [vmem:[%s1] sm:$0xf] %v4

// kernel: bottleneck_transform_forward.1
$region0: #{bottleneck_transform_forward.1}
  #allocation0 [shape = 'u32[]', space=smem, size = 0x4, offset = 0x4, fixed_abs, tag = 'smem constant byte address 0x4 - core index']
  #allocation1 [shape = 'u32[72,128]{1,0:T(1,128)}', space=vmem, size = 0x9000, scoped, tag = 'internal scratch']
  #allocation2 [shape = 'bf16[2,160,64]{2,1,0:T(8,128)(2,1)}', space=vmem, size = 0x14000, scoped, tag = 'scratch operand']
  %s0 = inlined_call_operand.vmem [shape: bf16[320,32], index: 0, kind: input, shape index: {}]
  %s1 = inlined_call_operand.vmem [shape: bf16[288,64], index: 1, kind: input, shape index: {}]
  %s2 = inlined_call_operand.vmem [shape: bf16[328,64], index: 2, kind: input, shape index: {}]
  %s3 = inlined_call_operand.vmem [shape: f32[8,64], index: 3, kind: input, shape index: {}]
  %s4 = inlined_call_operand.vmem [shape: bf16[256,16], index: 4, kind: output, shape index: {}]
  %s5 = sld [smem:[#allocation0]]
  $region26: #{bottleneck_transform_forward.1} parent=0
    _
  %s7 = ssub.s32 1, %s5
  %s8 = scalar_select 0, %s7, %s5
  // Predicated region
  $region2: #{bottleneck_transform_forward.1} parent=0 // pred_check
    _
  $region3: #{bottleneck_transform_forward.1} parent=0 // pred_check_branch
    %10 = sbr.rel (0) target = $region5
  $region4: #{bottleneck_transform_forward.1} parent=0 // pred_region
    _
  $region5: #{bottleneck_transform_forward.1} parent=0 // pred_fallthru
    _
  // Predicated region
  $region6: #{bottleneck_transform_forward.1} parent=0 // pred_check
    _
  $region7: #{bottleneck_transform_forward.1} parent=0 // pred_check_branch
    %12 = sbr.rel (0) target = $region9
  $region8: #{bottleneck_transform_forward.1} parent=0 // pred_region
    _
  $region9: #{bottleneck_transform_forward.1} parent=0 // pred_fallthru
    _
  // Predicated region
  $region10: #{bottleneck_transform_forward.1} parent=0 // pred_check
    _
  $region11: #{bottleneck_transform_forward.1} parent=0 // pred_check_branch
    %14 = sbr.rel (0) target = $region13
  $region12: #{bottleneck_transform_forward.1} parent=0 // pred_region
    _
  $region13: #{bottleneck_transform_forward.1} parent=0 // pred_fallthru
    _
  // Predicated region
  $region14: #{bottleneck_transform_forward.1} parent=0 // pred_check
    _
  $region15: #{bottleneck_transform_forward.1} parent=0 // pred_check_branch
    %16 = sbr.rel (0) target = $region17
  $region16: #{bottleneck_transform_forward.1} parent=0 // pred_region
    _
  $region17: #{bottleneck_transform_forward.1} parent=0 // pred_fallthru
    _
  %v18 = vld [vmem:[%s0] sm:$0xf]
  %v19 = vld [vmem:[%s0 + $0x4] sm:$0xf]
  %v20 = vld [vmem:[%s0 + $0x8] sm:$0xf]
  %v21 = vld [vmem:[%s0 + $0xc] sm:$0xf]
  %v22 = vld [vmem:[%s0 + $0x10] sm:$0xf]
  %v23 = vld [vmem:[%s0 + $0x14] sm:$0xf]
  %v24 = vld [vmem:[%s0 + $0x18] sm:$0xf]
  %v25 = vld [vmem:[%s0 + $0x1c] sm:$0xf]
  %v26 = vld [vmem:[%s0 + $0x20] sm:$0xf]
  %v27 = vld [vmem:[%s0 + $0x24] sm:$0xf]
  %v28 = vld [vmem:[%s0 + $0x28] sm:$0xf]
  %v29 = vld [vmem:[%s0 + $0x2c] sm:$0xf]
  %v30 = vld [vmem:[%s0 + $0x30] sm:$0xf]
  %v31 = vld [vmem:[%s0 + $0x34] sm:$0xf]
  %v32 = vld [vmem:[%s0 + $0x38] sm:$0xf]
  %v33 = vld [vmem:[%s0 + $0x3c] sm:$0xf]
  %v34 = vld [vmem:[%s0 + $0x40] sm:$0xf]
  %v35 = vld [vmem:[%s0 + $0x44] sm:$0xf]
  %v36 = vld [vmem:[%s0 + $0x48] sm:$0xf]
  %v37 = vld [vmem:[%s0 + $0x4c] sm:$0xf]
  %v38 = vld [vmem:[%s0 + $0x50] sm:$0xf]
  %v39 = vld [vmem:[%s0 + $0x54] sm:$0xf]
  %v40 = vld [vmem:[%s0 + $0x58] sm:$0xf]
  %v41 = vld [vmem:[%s0 + $0x5c] sm:$0xf]
  %v42 = vld [vmem:[%s0 + $0x60] sm:$0xf]
  %v43 = vld [vmem:[%s0 + $0x64] sm:$0xf]
  %v44 = vld [vmem:[%s0 + $0x68] sm:$0xf]
  %v45 = vld [vmem:[%s0 + $0x6c] sm:$0xf]
  %v46 = vld [vmem:[%s0 + $0x70] sm:$0xf]
  %v47 = vld [vmem:[%s0 + $0x74] sm:$0xf]
  %v48 = vld [vmem:[%s0 + $0x78] sm:$0xf]
  %v49 = vld [vmem:[%s0 + $0x7c] sm:$0xf]
  %v50 = vld [vmem:[%s0 + $0x80] sm:$0xf]
  %v51 = vld [vmem:[%s0 + $0x84] sm:$0xf]
  %v52 = vld [vmem:[%s0 + $0x88] sm:$0xf]
  %v53 = vld [vmem:[%s0 + $0x8c] sm:$0xf]
  %v54 = vld [vmem:[%s0 + $0x90] sm:$0xf]
  %v55 = vld [vmem:[%s0 + $0x94] sm:$0xf]
  %v56 = vld [vmem:[%s0 + $0x98] sm:$0xf]
  %v57 = vld [vmem:[%s0 + $0x9c] sm:$0xf]
  %v58 = vld [vmem:[%s2] sm:$0xf]
  %v59 = vld [vmem:[%s2 + $0x4] sm:$0xf]
  %v60 = vld [vmem:[%s2 + $0x8] sm:$0xf]
  %v61 = vld [vmem:[%s2 + $0xc] sm:$0xf]
  %v102 = vunpack.c.l.b16 %v18
  %v103 = vunpack.c.l.b16 %v19
  %v104 = vunpack.c.l.b16 %v20
  %v105 = vunpack.c.l.b16 %v21
  %v106 = vunpack.c.l.b16 %v22
  %v107 = vunpack.c.l.b16 %v23
  %v108 = vunpack.c.l.b16 %v24
  %v109 = vunpack.c.l.b16 %v25
  %v110 = vunpack.c.l.b16 %v26
  %v111 = vunpack.c.l.b16 %v27
  %v112 = vunpack.c.l.b16 %v28
  %v113 = vunpack.c.l.b16 %v29
  %v114 = vunpack.c.l.b16 %v30
  %v115 = vunpack.c.l.b16 %v31
  %v116 = vunpack.c.l.b16 %v32
  %v117 = vunpack.c.l.b16 %v33
  %v118 = vunpack.c.l.b16 %v34
  %v119 = vunpack.c.l.b16 %v35
  %v120 = vunpack.c.l.b16 %v36
  %v121 = vunpack.c.l.b16 %v37
  %v122 = vunpack.c.l.b16 %v38
  %v123 = vunpack.c.l.b16 %v39
  %v124 = vunpack.c.l.b16 %v40
  %v125 = vunpack.c.l.b16 %v41
  %v126 = vunpack.c.l.b16 %v42
  %v127 = vunpack.c.l.b16 %v43
  %v128 = vunpack.c.l.b16 %v44
  %v129 = vunpack.c.l.b16 %v45
  %v130 = vunpack.c.l.b16 %v46
  %v131 = vunpack.c.l.b16 %v47
  %v132 = vunpack.c.l.b16 %v48
  %v133 = vunpack.c.l.b16 %v49
  %v134 = vunpack.c.l.b16 %v50
  %v135 = vunpack.c.l.b16 %v51
  %v136 = vunpack.c.l.b16 %v52
  %v137 = vunpack.c.l.b16 %v53
  %v138 = vunpack.c.l.b16 %v54
  %v139 = vunpack.c.l.b16 %v55
  %v140 = vunpack.c.l.b16 %v56
  %v141 = vunpack.c.l.b16 %v57
  %v142 = vpack.c.b16 %v103, %v102
  %v143 = vpack.c.b16 %v105, %v104
  %v144 = vpack.c.b16 %v107, %v106
  %v145 = vpack.c.b16 %v109, %v108
  %v146 = vpack.c.b16 %v111, %v110
  %v147 = vpack.c.b16 %v113, %v112
  %v148 = vpack.c.b16 %v115, %v114
  %v149 = vpack.c.b16 %v117, %v116
  %v150 = vpack.c.b16 %v119, %v118
  %v151 = vpack.c.b16 %v121, %v120
  %v152 = vpack.c.b16 %v123, %v122
  %v153 = vpack.c.b16 %v125, %v124
  %v154 = vpack.c.b16 %v127, %v126
  %v155 = vpack.c.b16 %v129, %v128
  %v156 = vpack.c.b16 %v131, %v130
  %v157 = vpack.c.b16 %v133, %v132
  %v158 = vpack.c.b16 %v135, %v134
  %v159 = vpack.c.b16 %v137, %v136
  %v160 = vpack.c.b16 %v139, %v138
  %v161 = vpack.c.b16 %v141, %v140
  %v166 = vunpack.c.l.b16 %v58
  %v167 = vunpack.c.l.b16 %v59
  %v168 = vunpack.c.l.b16 %v60
  %v169 = vunpack.c.l.b16 %v61
  %v170 = vpack.c.b16 %v167, %v166
  %v171 = vpack.c.b16 %v169, %v168
  %vm174 = vcmask 261120
  %v176 = vsel %vm174, %v142, 0
  %v179 = vsel %vm174, %v143, 0
  %v182 = vsel %vm174, %v144, 0
  %v185 = vsel %vm174, %v145, 0
  %v188 = vsel %vm174, %v146, 0
  %v191 = vsel %vm174, %v147, 0
  %v194 = vsel %vm174, %v148, 0
  %v197 = vsel %vm174, %v149, 0
  %v200 = vsel %vm174, %v150, 0
  %v203 = vsel %vm174, %v151, 0
  %v206 = vsel %vm174, %v152, 0
  %v209 = vsel %vm174, %v153, 0
  %v212 = vsel %vm174, %v154, 0
  %v215 = vsel %vm174, %v155, 0
  %v218 = vsel %vm174, %v156, 0
  %v221 = vsel %vm174, %v157, 0
  %v224 = vsel %vm174, %v158, 0
  %v227 = vsel %vm174, %v159, 0
  %v230 = vsel %vm174, %v160, 0
  %v233 = vsel %vm174, %v161, 0
  %235 = vmatpush.bf16.msra.mxu0 0
  %236 = vmatpush.bf16.msra.mxu0 0
  %237 = vmatpush.bf16.msra.mxu0 0
  %238 = vmatpush.bf16.msra.mxu0 0
  %239 = vmatpush.bf16.msra.mxu0 0
  %240 = vmatpush.bf16.msra.mxu0 0
  %241 = vmatpush.bf16.msra.mxu0 %v171
  %242 = vmatpush.bf16.msra.mxu0 %v170
  %243 = vmatmul.bf16.gmra.mxu0 %v176
  %v244 = vpop.f32.mrf.mxu0
  %v245 = vadd.f32 0.0, %v244
  %v246 = vpop.f32.mrf.mxu0
  %v247 = vadd.f32 0.0, %v246
  %248 = vmatmul.bf16.gmra.mxu0 %v179
  %v249 = vpop.f32.mrf.mxu0
  %v250 = vadd.f32 0.0, %v249
  %v251 = vpop.f32.mrf.mxu0
  %v252 = vadd.f32 0.0, %v251
  %253 = vmatmul.bf16.gmra.mxu0 %v182
  %v254 = vpop.f32.mrf.mxu0
  %v255 = vadd.f32 0.0, %v254
  %v256 = vpop.f32.mrf.mxu0
  %v257 = vadd.f32 0.0, %v256
  %258 = vmatmul.bf16.gmra.mxu0 %v185
  %v259 = vpop.f32.mrf.mxu0
  %v260 = vadd.f32 0.0, %v259
  %v261 = vpop.f32.mrf.mxu0
  %v262 = vadd.f32 0.0, %v261
  %263 = vmatmul.bf16.gmra.mxu0 %v188
  %v264 = vpop.f32.mrf.mxu0
  %v265 = vadd.f32 0.0, %v264
  %v266 = vpop.f32.mrf.mxu0
  %v267 = vadd.f32 0.0, %v266
  %268 = vmatmul.bf16.gmra.mxu0 %v191
  %v269 = vpop.f32.mrf.mxu0
  %v270 = vadd.f32 0.0, %v269
  %v271 = vpop.f32.mrf.mxu0
  %v272 = vadd.f32 0.0, %v271
  %273 = vmatmul.bf16.gmra.mxu0 %v194
  %v274 = vpop.f32.mrf.mxu0
  %v275 = vadd.f32 0.0, %v274
  %v276 = vpop.f32.mrf.mxu0
  %v277 = vadd.f32 0.0, %v276
  %278 = vmatmul.bf16.gmra.mxu0 %v197
  %v279 = vpop.f32.mrf.mxu0
  %v280 = vadd.f32 0.0, %v279
  %v281 = vpop.f32.mrf.mxu0
  %v282 = vadd.f32 0.0, %v281
  %283 = vmatmul.bf16.gmra.mxu0 %v200
  %v284 = vpop.f32.mrf.mxu0
  %v285 = vadd.f32 0.0, %v284
  %v286 = vpop.f32.mrf.mxu0
  %v287 = vadd.f32 0.0, %v286
  %288 = vmatmul.bf16.gmra.mxu0 %v203
  %v289 = vpop.f32.mrf.mxu0
  %v290 = vadd.f32 0.0, %v289
  %v291 = vpop.f32.mrf.mxu0
  %v292 = vadd.f32 0.0, %v291
  %293 = vmatmul.bf16.gmra.mxu0 %v206
  %v294 = vpop.f32.mrf.mxu0
  %v295 = vadd.f32 0.0, %v294
  %v296 = vpop.f32.mrf.mxu0
  %v297 = vadd.f32 0.0, %v296
  %298 = vmatmul.bf16.gmra.mxu0 %v209
  %v299 = vpop.f32.mrf.mxu0
  %v300 = vadd.f32 0.0, %v299
  %v301 = vpop.f32.mrf.mxu0
  %v302 = vadd.f32 0.0, %v301
  %303 = vmatmul.bf16.gmra.mxu0 %v212
  %v304 = vpop.f32.mrf.mxu0
  %v305 = vadd.f32 0.0, %v304
  %v306 = vpop.f32.mrf.mxu0
  %v307 = vadd.f32 0.0, %v306
  %308 = vmatmul.bf16.gmra.mxu0 %v215
  %v309 = vpop.f32.mrf.mxu0
  %v310 = vadd.f32 0.0, %v309
  %v311 = vpop.f32.mrf.mxu0
  %v312 = vadd.f32 0.0, %v311
  %313 = vmatmul.bf16.gmra.mxu0 %v218
  %v314 = vpop.f32.mrf.mxu0
  %v315 = vadd.f32 0.0, %v314
  %v316 = vpop.f32.mrf.mxu0
  %v317 = vadd.f32 0.0, %v316
  %318 = vmatmul.bf16.gmra.mxu0 %v221
  %v319 = vpop.f32.mrf.mxu0
  %v320 = vadd.f32 0.0, %v319
  %v321 = vpop.f32.mrf.mxu0
  %v322 = vadd.f32 0.0, %v321
  %323 = vmatmul.bf16.gmra.mxu0 %v224
  %v324 = vpop.f32.mrf.mxu0
  %v325 = vadd.f32 0.0, %v324
  %v326 = vpop.f32.mrf.mxu0
  %v327 = vadd.f32 0.0, %v326
  %328 = vmatmul.bf16.gmra.mxu0 %v227
  %v329 = vpop.f32.mrf.mxu0
  %v330 = vadd.f32 0.0, %v329
  %v331 = vpop.f32.mrf.mxu0
  %v332 = vadd.f32 0.0, %v331
  %333 = vmatmul.bf16.gmra.mxu0 %v230
  %v334 = vpop.f32.mrf.mxu0
  %v335 = vadd.f32 0.0, %v334
  %v336 = vpop.f32.mrf.mxu0
  %v337 = vadd.f32 0.0, %v336
  %338 = vmatmul.bf16.gmra.mxu0 %v233
  %v339 = vpop.f32.mrf.mxu0
  %v340 = vadd.f32 0.0, %v339
  %v341 = vpop.f32.mrf.mxu0
  %v342 = vadd.f32 0.0, %v341
  %343 = vdwg.mxu0
  %v344 = vld [vmem:[%s3] sm:$0x1]
  %v345 = vperm.slane %v344, 0
  %v346 = vmul.f32 %v245, %v345
  %v347 = vmul.f32 %v247, %v345
  %v348 = vmul.f32 %v250, %v345
  %v349 = vmul.f32 %v252, %v345
  %v350 = vmul.f32 %v255, %v345
  %v351 = vmul.f32 %v257, %v345
  %v352 = vmul.f32 %v260, %v345
  %v353 = vmul.f32 %v262, %v345
  %v354 = vmul.f32 %v265, %v345
  %v355 = vmul.f32 %v267, %v345
  %v356 = vmul.f32 %v270, %v345
  %v357 = vmul.f32 %v272, %v345
  %v358 = vmul.f32 %v275, %v345
  %v359 = vmul.f32 %v277, %v345
  %v360 = vmul.f32 %v280, %v345
  %v361 = vmul.f32 %v282, %v345
  %v362 = vmul.f32 %v285, %v345
  %v363 = vmul.f32 %v287, %v345
  %v364 = vmul.f32 %v290, %v345
  %v365 = vmul.f32 %v292, %v345
  %v366 = vmul.f32 %v295, %v345
  %v367 = vmul.f32 %v297, %v345
  %v368 = vmul.f32 %v300, %v345
  %v369 = vmul.f32 %v302, %v345
  %v370 = vmul.f32 %v305, %v345
  %v371 = vmul.f32 %v307, %v345
  %v372 = vmul.f32 %v310, %v345
  %v373 = vmul.f32 %v312, %v345
  %v374 = vmul.f32 %v315, %v345
  %v375 = vmul.f32 %v317, %v345
  %v376 = vmul.f32 %v320, %v345
  %v377 = vmul.f32 %v322, %v345
  %v378 = vmul.f32 %v325, %v345
  %v379 = vmul.f32 %v327, %v345
  %v380 = vmul.f32 %v330, %v345
  %v381 = vmul.f32 %v332, %v345
  %v382 = vmul.f32 %v335, %v345
  %v383 = vmul.f32 %v337, %v345
  %v384 = vmul.f32 %v340, %v345
  %v385 = vmul.f32 %v342, %v345
  %v386 = vld [vmem:[%s3 + $0x1] sm:$0x1]
  %v387 = vperm.slane %v386, 0
  %v388 = vadd.f32 %v346, %v387
  %v389 = vadd.f32 %v347, %v387
  %v390 = vadd.f32 %v348, %v387
  %v391 = vadd.f32 %v349, %v387
  %v392 = vadd.f32 %v350, %v387
  %v393 = vadd.f32 %v351, %v387
  %v394 = vadd.f32 %v352, %v387
  %v395 = vadd.f32 %v353, %v387
  %v396 = vadd.f32 %v354, %v387
  %v397 = vadd.f32 %v355, %v387
  %v398 = vadd.f32 %v356, %v387
  %v399 = vadd.f32 %v357, %v387
  %v400 = vadd.f32 %v358, %v387
  %v401 = vadd.f32 %v359, %v387
  %v402 = vadd.f32 %v360, %v387
  %v403 = vadd.f32 %v361, %v387
  %v404 = vadd.f32 %v362, %v387
  %v405 = vadd.f32 %v363, %v387
  %v406 = vadd.f32 %v364, %v387
  %v407 = vadd.f32 %v365, %v387
  %v408 = vadd.f32 %v366, %v387
  %v409 = vadd.f32 %v367, %v387
  %v410 = vadd.f32 %v368, %v387
  %v411 = vadd.f32 %v369, %v387
  %v412 = vadd.f32 %v370, %v387
  %v413 = vadd.f32 %v371, %v387
  %v414 = vadd.f32 %v372, %v387
  %v415 = vadd.f32 %v373, %v387
  %v416 = vadd.f32 %v374, %v387
  %v417 = vadd.f32 %v375, %v387
  %v418 = vadd.f32 %v376, %v387
  %v419 = vadd.f32 %v377, %v387
  %v420 = vadd.f32 %v378, %v387
  %v421 = vadd.f32 %v379, %v387
  %v422 = vadd.f32 %v380, %v387
  %v423 = vadd.f32 %v381, %v387
  %v424 = vadd.f32 %v382, %v387
  %v425 = vadd.f32 %v383, %v387
  %v426 = vadd.f32 %v384, %v387
  %v427 = vadd.f32 %v385, %v387
  %v428 = vmax.f32 %v388, 0.0
  %v429 = vmax.f32 %v389, 0.0
  %v430 = vmax.f32 %v390, 0.0
  %v431 = vmax.f32 %v391, 0.0
  %v432 = vmax.f32 %v392, 0.0
  %v433 = vmax.f32 %v393, 0.0
  %v434 = vmax.f32 %v394, 0.0
  %v435 = vmax.f32 %v395, 0.0
  %v436 = vmax.f32 %v396, 0.0
  %v437 = vmax.f32 %v397, 0.0
  %v438 = vmax.f32 %v398, 0.0
  %v439 = vmax.f32 %v399, 0.0
  %v440 = vmax.f32 %v400, 0.0
  %v441 = vmax.f32 %v401, 0.0
  %v442 = vmax.f32 %v402, 0.0
  %v443 = vmax.f32 %v403, 0.0
  %v444 = vmax.f32 %v404, 0.0
  %v445 = vmax.f32 %v405, 0.0
  %v446 = vmax.f32 %v406, 0.0
  %v447 = vmax.f32 %v407, 0.0
  %v448 = vmax.f32 %v408, 0.0
  %v449 = vmax.f32 %v409, 0.0
  %v450 = vmax.f32 %v410, 0.0
  %v451 = vmax.f32 %v411, 0.0
  %v452 = vmax.f32 %v412, 0.0
  %v453 = vmax.f32 %v413, 0.0
  %v454 = vmax.f32 %v414, 0.0
  %v455 = vmax.f32 %v415, 0.0
  %v456 = vmax.f32 %v416, 0.0
  %v457 = vmax.f32 %v417, 0.0
  %v458 = vmax.f32 %v418, 0.0
  %v459 = vmax.f32 %v419, 0.0
  %v460 = vmax.f32 %v420, 0.0
  %v461 = vmax.f32 %v421, 0.0
  %v462 = vmax.f32 %v422, 0.0
  %v463 = vmax.f32 %v423, 0.0
  %v464 = vmax.f32 %v424, 0.0
  %v465 = vmax.f32 %v425, 0.0
  %v466 = vmax.f32 %v426, 0.0
  %v467 = vmax.f32 %v427, 0.0
  %v468 = vld [vmem:[%s1] sm:$0xf]
  %v469 = vld [vmem:[%s1 + $0x4] sm:$0xf]
  %v470 = vld [vmem:[%s1 + $0x8] sm:$0xf]
  %v471 = vld [vmem:[%s1 + $0xc] sm:$0xf]
  %v472 = vld [vmem:[%s1 + $0x10] sm:$0xf]
  %v473 = vld [vmem:[%s1 + $0x14] sm:$0xf]
  %v474 = vld [vmem:[%s1 + $0x18] sm:$0xf]
  %v475 = vld [vmem:[%s1 + $0x1c] sm:$0xf]
  %v476 = vld [vmem:[%s1 + $0x20] sm:$0xf]
  %v477 = vld [vmem:[%s1 + $0x24] sm:$0xf]
  %v478 = vld [vmem:[%s1 + $0x28] sm:$0xf]
  %v479 = vld [vmem:[%s1 + $0x2c] sm:$0xf]
  %v480 = vld [vmem:[%s1 + $0x30] sm:$0xf]
  %v481 = vld [vmem:[%s1 + $0x34] sm:$0xf]
  %v482 = vld [vmem:[%s1 + $0x38] sm:$0xf]
  %v483 = vld [vmem:[%s1 + $0x3c] sm:$0xf]
  %v484 = vld [vmem:[%s1 + $0x40] sm:$0xf]
  %v485 = vld [vmem:[%s1 + $0x44] sm:$0xf]
  %v486 = vld [vmem:[%s1 + $0x48] sm:$0xf]
  %v487 = vld [vmem:[%s1 + $0x4c] sm:$0xf]
  %v488 = vunpack.c.l.bf16 %v468
  %v489 = vunpack.c.l.bf16 %v469
  %v490 = vunpack.c.l.bf16 %v470
  %v491 = vunpack.c.l.bf16 %v471
  %v492 = vunpack.c.l.bf16 %v472
  %v493 = vunpack.c.l.bf16 %v473
  %v494 = vunpack.c.l.bf16 %v474
  %v495 = vunpack.c.l.bf16 %v475
  %v496 = vunpack.c.l.bf16 %v476
  %v497 = vunpack.c.l.bf16 %v477
  %v498 = vunpack.c.l.bf16 %v478
  %v499 = vunpack.c.l.bf16 %v479
  %v500 = vunpack.c.l.bf16 %v480
  %v501 = vunpack.c.l.bf16 %v481
  %v502 = vunpack.c.l.bf16 %v482
  %v503 = vunpack.c.l.bf16 %v483
  %v504 = vunpack.c.l.bf16 %v484
  %v505 = vunpack.c.l.bf16 %v485
  %v506 = vunpack.c.l.bf16 %v486
  %v507 = vunpack.c.l.bf16 %v487
  %v508 = vmul.f32 %v428, %v488
  %v509 = vmul.f32 %v429, %v489
  %v510 = vmul.f32 %v430, %v490
  %v511 = vmul.f32 %v431, %v491
  %v512 = vmul.f32 %v432, %v492
  %v513 = vmul.f32 %v433, %v493
  %v514 = vmul.f32 %v434, %v494
  %v515 = vmul.f32 %v435, %v495
  %v516 = vmul.f32 %v436, %v496
  %v517 = vmul.f32 %v437, %v497
  %v518 = vmul.f32 %v438, %v498
  %v519 = vmul.f32 %v439, %v499
  %v520 = vmul.f32 %v440, %v500
  %v521 = vmul.f32 %v441, %v501
  %v522 = vmul.f32 %v442, %v502
  %v523 = vmul.f32 %v443, %v503
  %v524 = vmul.f32 %v444, %v504
  %v525 = vmul.f32 %v445, %v505
  %v526 = vmul.f32 %v446, %v506
  %v527 = vmul.f32 %v447, %v507
  %v528 = vmul.f32 %v448, %v488
  %v529 = vmul.f32 %v449, %v489
  %v530 = vmul.f32 %v450, %v490
  %v531 = vmul.f32 %v451, %v491
  %v532 = vmul.f32 %v452, %v492
  %v533 = vmul.f32 %v453, %v493
  %v534 = vmul.f32 %v454, %v494
  %v535 = vmul.f32 %v455, %v495
  %v536 = vmul.f32 %v456, %v496
  %v537 = vmul.f32 %v457, %v497
  %v538 = vmul.f32 %v458, %v498
  %v539 = vmul.f32 %v459, %v499
  %v540 = vmul.f32 %v460, %v500
  %v541 = vmul.f32 %v461, %v501
  %v542 = vmul.f32 %v462, %v502
  %v543 = vmul.f32 %v463, %v503
  %v544 = vmul.f32 %v464, %v504
  %v545 = vmul.f32 %v465, %v505
  %v546 = vmul.f32 %v466, %v506
  %v547 = vmul.f32 %v467, %v507
  %v548 = vpack.c.bf16 %v508, %v508
  %v549 = vpack.c.bf16 %v509, %v509
  %v550 = vpack.c.bf16 %v510, %v510
  %v551 = vpack.c.bf16 %v511, %v511
  %v552 = vpack.c.bf16 %v512, %v512
  %v553 = vpack.c.bf16 %v513, %v513
  %v554 = vpack.c.bf16 %v514, %v514
  %v555 = vpack.c.bf16 %v515, %v515
  %v556 = vpack.c.bf16 %v516, %v516
  %v557 = vpack.c.bf16 %v517, %v517
  %v558 = vpack.c.bf16 %v518, %v518
  %v559 = vpack.c.bf16 %v519, %v519
  %v560 = vpack.c.bf16 %v520, %v520
  %v561 = vpack.c.bf16 %v521, %v521
  %v562 = vpack.c.bf16 %v522, %v522
  %v563 = vpack.c.bf16 %v523, %v523
  %v564 = vpack.c.bf16 %v524, %v524
  %v565 = vpack.c.bf16 %v525, %v525
  %v566 = vpack.c.bf16 %v526, %v526
  %v567 = vpack.c.bf16 %v527, %v527
  %v568 = vpack.c.bf16 %v528, %v528
  %v569 = vpack.c.bf16 %v529, %v529
  %v570 = vpack.c.bf16 %v530, %v530
  %v571 = vpack.c.bf16 %v531, %v531
  %v572 = vpack.c.bf16 %v532, %v532
  %v573 = vpack.c.bf16 %v533, %v533
  %v574 = vpack.c.bf16 %v534, %v534
  %v575 = vpack.c.bf16 %v535, %v535
  %v576 = vpack.c.bf16 %v536, %v536
  %v577 = vpack.c.bf16 %v537, %v537
  %v578 = vpack.c.bf16 %v538, %v538
  %v579 = vpack.c.bf16 %v539, %v539
  %v580 = vpack.c.bf16 %v540, %v540
  %v581 = vpack.c.bf16 %v541, %v541
  %v582 = vpack.c.bf16 %v542, %v542
  %v583 = vpack.c.bf16 %v543, %v543
  %v584 = vpack.c.bf16 %v544, %v544
  %v585 = vpack.c.bf16 %v545, %v545
  %v586 = vpack.c.bf16 %v546, %v546
  %v587 = vpack.c.bf16 %v547, %v547
  %vm588 = vcmask 519168
  %589 = vst.msk [vmem:[#allocation2] sm:$0xf] %vm588, %v548
  %590 = vst.msk [vmem:[#allocation2 + $0x4] sm:$0xf] %vm588, %v549
  %591 = vst.msk [vmem:[#allocation2 + $0x8] sm:$0xf] %vm588, %v550
  %592 = vst.msk [vmem:[#allocation2 + $0xc] sm:$0xf] %vm588, %v551
  %593 = vst.msk [vmem:[#allocation2 + $0x10] sm:$0xf] %vm588, %v552
  %594 = vst.msk [vmem:[#allocation2 + $0x14] sm:$0xf] %vm588, %v553
  %595 = vst.msk [vmem:[#allocation2 + $0x18] sm:$0xf] %vm588, %v554
  %596 = vst.msk [vmem:[#allocation2 + $0x1c] sm:$0xf] %vm588, %v555
  %597 = vst.msk [vmem:[#allocation2 + $0x20] sm:$0xf] %vm588, %v556
  %598 = vst.msk [vmem:[#allocation2 + $0x24] sm:$0xf] %vm588, %v557
  %599 = vst.msk [vmem:[#allocation2 + $0x28] sm:$0xf] %vm588, %v558
  %600 = vst.msk [vmem:[#allocation2 + $0x2c] sm:$0xf] %vm588, %v559
  %601 = vst.msk [vmem:[#allocation2 + $0x30] sm:$0xf] %vm588, %v560
  %602 = vst.msk [vmem:[#allocation2 + $0x34] sm:$0xf] %vm588, %v561
  %603 = vst.msk [vmem:[#allocation2 + $0x38] sm:$0xf] %vm588, %v562
  %604 = vst.msk [vmem:[#allocation2 + $0x3c] sm:$0xf] %vm588, %v563
  %605 = vst.msk [vmem:[#allocation2 + $0x40] sm:$0xf] %vm588, %v564
  %606 = vst.msk [vmem:[#allocation2 + $0x44] sm:$0xf] %vm588, %v565
  %607 = vst.msk [vmem:[#allocation2 + $0x48] sm:$0xf] %vm588, %v566
  %608 = vst.msk [vmem:[#allocation2 + $0x4c] sm:$0xf] %vm588, %v567
  %609 = vst.msk [vmem:[#allocation2 + $0x50] sm:$0xf] %vm588, %v568
  %610 = vst.msk [vmem:[#allocation2 + $0x54] sm:$0xf] %vm588, %v569
  %611 = vst.msk [vmem:[#allocation2 + $0x58] sm:$0xf] %vm588, %v570
  %612 = vst.msk [vmem:[#allocation2 + $0x5c] sm:$0xf] %vm588, %v571
  %613 = vst.msk [vmem:[#allocation2 + $0x60] sm:$0xf] %vm588, %v572
  %614 = vst.msk [vmem:[#allocation2 + $0x64] sm:$0xf] %vm588, %v573
  %615 = vst.msk [vmem:[#allocation2 + $0x68] sm:$0xf] %vm588, %v574
  %616 = vst.msk [vmem:[#allocation2 + $0x6c] sm:$0xf] %vm588, %v575
  %617 = vst.msk [vmem:[#allocation2 + $0x70] sm:$0xf] %vm588, %v576
  %618 = vst.msk [vmem:[#allocation2 + $0x74] sm:$0xf] %vm588, %v577
  %619 = vst.msk [vmem:[#allocation2 + $0x78] sm:$0xf] %vm588, %v578
  %620 = vst.msk [vmem:[#allocation2 + $0x7c] sm:$0xf] %vm588, %v579
  %621 = vst.msk [vmem:[#allocation2 + $0x80] sm:$0xf] %vm588, %v580
  %622 = vst.msk [vmem:[#allocation2 + $0x84] sm:$0xf] %vm588, %v581
  %623 = vst.msk [vmem:[#allocation2 + $0x88] sm:$0xf] %vm588, %v582
  %624 = vst.msk [vmem:[#allocation2 + $0x8c] sm:$0xf] %vm588, %v583
  %625 = vst.msk [vmem:[#allocation2 + $0x90] sm:$0xf] %vm588, %v584
  %626 = vst.msk [vmem:[#allocation2 + $0x94] sm:$0xf] %vm588, %v585
  %627 = vst.msk [vmem:[#allocation2 + $0x98] sm:$0xf] %vm588, %v586
  %628 = vst.msk [vmem:[#allocation2 + $0x9c] sm:$0xf] %vm588, %v587
  %v629 = vld [vmem:[#allocation2] sm:$0xf]
  %v630 = vld [vmem:[#allocation2 + $0x4] sm:$0xf]
  %v631 = vld [vmem:[#allocation2 + $0x8] sm:$0xf]
  %v632 = vld [vmem:[#allocation2 + $0xc] sm:$0xf]
  %v633 = vld [vmem:[#allocation2 + $0x10] sm:$0xf]
  %v634 = vld [vmem:[#allocation2 + $0x14] sm:$0xf]
  %v635 = vld [vmem:[#allocation2 + $0x18] sm:$0xf]
  %v636 = vld [vmem:[#allocation2 + $0x1c] sm:$0xf]
  %v637 = vld [vmem:[#allocation2 + $0x20] sm:$0xf]
  %v638 = vld [vmem:[#allocation2 + $0x24] sm:$0xf]
  %v639 = vld [vmem:[#allocation2 + $0x28] sm:$0xf]
  %v640 = vld [vmem:[#allocation2 + $0x2c] sm:$0xf]
  %v641 = vld [vmem:[#allocation2 + $0x30] sm:$0xf]
  %v642 = vld [vmem:[#allocation2 + $0x34] sm:$0xf]
  %v643 = vld [vmem:[#allocation2 + $0x38] sm:$0xf]
  %v644 = vld [vmem:[#allocation2 + $0x3c] sm:$0xf]
  %v645 = vld [vmem:[#allocation2 + $0x50] sm:$0xf]
  %v646 = vld [vmem:[#allocation2 + $0x54] sm:$0xf]
  %v647 = vld [vmem:[#allocation2 + $0x58] sm:$0xf]
  %v648 = vld [vmem:[#allocation2 + $0x5c] sm:$0xf]
  %v649 = vld [vmem:[#allocation2 + $0x60] sm:$0xf]
  %v650 = vld [vmem:[#allocation2 + $0x64] sm:$0xf]
  %v651 = vld [vmem:[#allocation2 + $0x68] sm:$0xf]
  %v652 = vld [vmem:[#allocation2 + $0x6c] sm:$0xf]
  %v653 = vld [vmem:[#allocation2 + $0x70] sm:$0xf]
  %v654 = vld [vmem:[#allocation2 + $0x74] sm:$0xf]
  %v655 = vld [vmem:[#allocation2 + $0x78] sm:$0xf]
  %v656 = vld [vmem:[#allocation2 + $0x7c] sm:$0xf]
  %v657 = vld [vmem:[#allocation2 + $0x80] sm:$0xf]
  %v658 = vld [vmem:[#allocation2 + $0x84] sm:$0xf]
  %v659 = vld [vmem:[#allocation2 + $0x88] sm:$0xf]
  %v660 = vld [vmem:[#allocation2 + $0x8c] sm:$0xf]
  %v661 = vld [vmem:[%s2 + $0x10] sm:$0xf]
  %v662 = vld [vmem:[%s2 + $0x14] sm:$0xf]
  %v663 = vld [vmem:[%s2 + $0x18] sm:$0xf]
  %v664 = vld [vmem:[%s2 + $0x1c] sm:$0xf]
  %v665 = vld [vmem:[%s2 + $0x20] sm:$0xf]
  %v666 = vld [vmem:[%s2 + $0x24] sm:$0xf]
  %v667 = vld [vmem:[%s2 + $0x28] sm:$0xf]
  %v668 = vld [vmem:[%s2 + $0x2c] sm:$0xf]
  %v669 = vld [vmem:[#allocation2 + $0x40] sm:$0x1]
  %v670 = vld [vmem:[#allocation2 + $0x90] sm:$0x1]
  %vm671 = vsmask.f32 3328
  %vm672 = vsmask.f32 7440
  %vm673 = vmor %vm671, %vm672
  %v675 = vshrl.u32 %v629, 16
  %v677 = vrot.slane %v675, 4
  %v678 = vshll.u32 %v629, 16
  %v680 = vrot.slane %v678, 5
  %v681 = vor.u32 %v677, %v680
  %v682 = vrot.slane %v681, 4
  %v684 = vshll.u32 %v630, 16
  %v686 = vrot.slane %v684, 5
  %v687 = vsel %vm673, %v682, %v686
  %v688 = vshrl.u32 %v630, 16
  %v690 = vrot.slane %v688, 4
  %v691 = vor.u32 %v690, %v686
  %v692 = vrot.slane %v691, 4
  %v694 = vshll.u32 %v631, 16
  %v696 = vrot.slane %v694, 5
  %v697 = vsel %vm673, %v692, %v696
  %v698 = vshrl.u32 %v631, 16
  %v700 = vrot.slane %v698, 4
  %v701 = vor.u32 %v700, %v696
  %v702 = vrot.slane %v701, 4
  %v704 = vshll.u32 %v632, 16
  %v706 = vrot.slane %v704, 5
  %v707 = vsel %vm673, %v702, %v706
  %v708 = vshrl.u32 %v632, 16
  %v710 = vrot.slane %v708, 4
  %v711 = vor.u32 %v710, %v706
  %v712 = vrot.slane %v711, 4
  %v714 = vshll.u32 %v633, 16
  %v716 = vrot.slane %v714, 5
  %v717 = vsel %vm673, %v712, %v716
  %v718 = vshrl.u32 %v633, 16
  %v720 = vrot.slane %v718, 4
  %v721 = vor.u32 %v720, %v716
  %v722 = vrot.slane %v721, 4
  %v724 = vshll.u32 %v634, 16
  %v726 = vrot.slane %v724, 5
  %v727 = vsel %vm673, %v722, %v726
  %v728 = vshrl.u32 %v634, 16
  %v730 = vrot.slane %v728, 4
  %v731 = vor.u32 %v730, %v726
  %v732 = vrot.slane %v731, 4
  %v734 = vshll.u32 %v635, 16
  %v736 = vrot.slane %v734, 5
  %v737 = vsel %vm673, %v732, %v736
  %v738 = vshrl.u32 %v635, 16
  %v740 = vrot.slane %v738, 4
  %v741 = vor.u32 %v740, %v736
  %v742 = vrot.slane %v741, 4
  %v744 = vshll.u32 %v636, 16
  %v746 = vrot.slane %v744, 5
  %v747 = vsel %vm673, %v742, %v746
  %v748 = vshrl.u32 %v636, 16
  %v750 = vrot.slane %v748, 4
  %v751 = vor.u32 %v750, %v746
  %v752 = vrot.slane %v751, 4
  %v754 = vshll.u32 %v637, 16
  %v756 = vrot.slane %v754, 5
  %v757 = vsel %vm673, %v752, %v756
  %v758 = vshrl.u32 %v637, 16
  %v760 = vrot.slane %v758, 4
  %v761 = vor.u32 %v760, %v756
  %v762 = vrot.slane %v761, 4
  %v764 = vshll.u32 %v638, 16
  %v766 = vrot.slane %v764, 5
  %v767 = vsel %vm673, %v762, %v766
  %v768 = vshrl.u32 %v638, 16
  %v770 = vrot.slane %v768, 4
  %v771 = vor.u32 %v770, %v766
  %v772 = vrot.slane %v771, 4
  %v774 = vshll.u32 %v639, 16
  %v776 = vrot.slane %v774, 5
  %v777 = vsel %vm673, %v772, %v776
  %v778 = vshrl.u32 %v639, 16
  %v780 = vrot.slane %v778, 4
  %v781 = vor.u32 %v780, %v776
  %v782 = vrot.slane %v781, 4
  %v784 = vshll.u32 %v640, 16
  %v786 = vrot.slane %v784, 5
  %v787 = vsel %vm673, %v782, %v786
  %v788 = vshrl.u32 %v640, 16
  %v790 = vrot.slane %v788, 4
  %v791 = vor.u32 %v790, %v786
  %v792 = vrot.slane %v791, 4
  %v794 = vshll.u32 %v641, 16
  %v796 = vrot.slane %v794, 5
  %v797 = vsel %vm673, %v792, %v796
  %v798 = vshrl.u32 %v641, 16
  %v800 = vrot.slane %v798, 4
  %v801 = vor.u32 %v800, %v796
  %v802 = vrot.slane %v801, 4
  %v804 = vshll.u32 %v642, 16
  %v806 = vrot.slane %v804, 5
  %v807 = vsel %vm673, %v802, %v806
  %v808 = vshrl.u32 %v642, 16
  %v810 = vrot.slane %v808, 4
  %v811 = vor.u32 %v810, %v806
  %v812 = vrot.slane %v811, 4
  %v814 = vshll.u32 %v643, 16
  %v816 = vrot.slane %v814, 5
  %v817 = vsel %vm673, %v812, %v816
  %v818 = vshrl.u32 %v643, 16
  %v820 = vrot.slane %v818, 4
  %v821 = vor.u32 %v820, %v816
  %v822 = vrot.slane %v821, 4
  %v824 = vshll.u32 %v644, 16
  %v826 = vrot.slane %v824, 5
  %v827 = vsel %vm673, %v822, %v826
  %v828 = vshrl.u32 %v644, 16
  %v830 = vrot.slane %v828, 4
  %v831 = vor.u32 %v830, %v826
  %v832 = vrot.slane %v831, 4
  %v834 = vshll.u32 %v669, 16
  %v836 = vrot.slane %v834, 5
  %v837 = vsel %vm673, %v832, %v836
  %v839 = vshrl.u32 %v645, 16
  %v841 = vrot.slane %v839, 4
  %v842 = vshll.u32 %v645, 16
  %v844 = vrot.slane %v842, 5
  %v845 = vor.u32 %v841, %v844
  %v846 = vrot.slane %v845, 4
  %v848 = vshll.u32 %v646, 16
  %v850 = vrot.slane %v848, 5
  %v851 = vsel %vm673, %v846, %v850
  %v852 = vshrl.u32 %v646, 16
  %v854 = vrot.slane %v852, 4
  %v855 = vor.u32 %v854, %v850
  %v856 = vrot.slane %v855, 4
  %v858 = vshll.u32 %v647, 16
  %v860 = vrot.slane %v858, 5
  %v861 = vsel %vm673, %v856, %v860
  %v862 = vshrl.u32 %v647, 16
  %v864 = vrot.slane %v862, 4
  %v865 = vor.u32 %v864, %v860
  %v866 = vrot.slane %v865, 4
  %v868 = vshll.u32 %v648, 16
  %v870 = vrot.slane %v868, 5
  %v871 = vsel %vm673, %v866, %v870
  %v872 = vshrl.u32 %v648, 16
  %v874 = vrot.slane %v872, 4
  %v875 = vor.u32 %v874, %v870
  %v876 = vrot.slane %v875, 4
  %v878 = vshll.u32 %v649, 16
  %v880 = vrot.slane %v878, 5
  %v881 = vsel %vm673, %v876, %v880
  %v882 = vshrl.u32 %v649, 16
  %v884 = vrot.slane %v882, 4
  %v885 = vor.u32 %v884, %v880
  %v886 = vrot.slane %v885, 4
  %v888 = vshll.u32 %v650, 16
  %v890 = vrot.slane %v888, 5
  %v891 = vsel %vm673, %v886, %v890
  %v892 = vshrl.u32 %v650, 16
  %v894 = vrot.slane %v892, 4
  %v895 = vor.u32 %v894, %v890
  %v896 = vrot.slane %v895, 4
  %v898 = vshll.u32 %v651, 16
  %v900 = vrot.slane %v898, 5
  %v901 = vsel %vm673, %v896, %v900
  %v902 = vshrl.u32 %v651, 16
  %v904 = vrot.slane %v902, 4
  %v905 = vor.u32 %v904, %v900
  %v906 = vrot.slane %v905, 4
  %v908 = vshll.u32 %v652, 16
  %v910 = vrot.slane %v908, 5
  %v911 = vsel %vm673, %v906, %v910
  %v912 = vshrl.u32 %v652, 16
  %v914 = vrot.slane %v912, 4
  %v915 = vor.u32 %v914, %v910
  %v916 = vrot.slane %v915, 4
  %v918 = vshll.u32 %v653, 16
  %v920 = vrot.slane %v918, 5
  %v921 = vsel %vm673, %v916, %v920
  %v922 = vshrl.u32 %v653, 16
  %v924 = vrot.slane %v922, 4
  %v925 = vor.u32 %v924, %v920
  %v926 = vrot.slane %v925, 4
  %v928 = vshll.u32 %v654, 16
  %v930 = vrot.slane %v928, 5
  %v931 = vsel %vm673, %v926, %v930
  %v932 = vshrl.u32 %v654, 16
  %v934 = vrot.slane %v932, 4
  %v935 = vor.u32 %v934, %v930
  %v936 = vrot.slane %v935, 4
  %v938 = vshll.u32 %v655, 16
  %v940 = vrot.slane %v938, 5
  %v941 = vsel %vm673, %v936, %v940
  %v942 = vshrl.u32 %v655, 16
  %v944 = vrot.slane %v942, 4
  %v945 = vor.u32 %v944, %v940
  %v946 = vrot.slane %v945, 4
  %v948 = vshll.u32 %v656, 16
  %v950 = vrot.slane %v948, 5
  %v951 = vsel %vm673, %v946, %v950
  %v952 = vshrl.u32 %v656, 16
  %v954 = vrot.slane %v952, 4
  %v955 = vor.u32 %v954, %v950
  %v956 = vrot.slane %v955, 4
  %v958 = vshll.u32 %v657, 16
  %v960 = vrot.slane %v958, 5
  %v961 = vsel %vm673, %v956, %v960
  %v962 = vshrl.u32 %v657, 16
  %v964 = vrot.slane %v962, 4
  %v965 = vor.u32 %v964, %v960
  %v966 = vrot.slane %v965, 4
  %v968 = vshll.u32 %v658, 16
  %v970 = vrot.slane %v968, 5
  %v971 = vsel %vm673, %v966, %v970
  %v972 = vshrl.u32 %v658, 16
  %v974 = vrot.slane %v972, 4
  %v975 = vor.u32 %v974, %v970
  %v976 = vrot.slane %v975, 4
  %v978 = vshll.u32 %v659, 16
  %v980 = vrot.slane %v978, 5
  %v981 = vsel %vm673, %v976, %v980
  %v982 = vshrl.u32 %v659, 16
  %v984 = vrot.slane %v982, 4
  %v985 = vor.u32 %v984, %v980
  %v986 = vrot.slane %v985, 4
  %v988 = vshll.u32 %v660, 16
  %v990 = vrot.slane %v988, 5
  %v991 = vsel %vm673, %v986, %v990
  %v992 = vshrl.u32 %v660, 16
  %v994 = vrot.slane %v992, 4
  %v995 = vor.u32 %v994, %v990
  %v996 = vrot.slane %v995, 4
  %v998 = vshll.u32 %v670, 16
  %v1000 = vrot.slane %v998, 5
  %v1001 = vsel %vm673, %v996, %v1000
  %v1002 = vld [vmem:[%s2 + $0x30] sm:$0xf]
  %v1003 = vld [vmem:[%s2 + $0x34] sm:$0xf]
  %v1004 = vld [vmem:[%s2 + $0x38] sm:$0xf]
  %v1005 = vld [vmem:[%s2 + $0x3c] sm:$0xf]
  %v1006 = vld [vmem:[%s2 + $0x40] sm:$0xf]
  %v1007 = vld [vmem:[%s2 + $0x44] sm:$0xf]
  %v1008 = vld [vmem:[%s2 + $0x48] sm:$0xf]
  %v1009 = vld [vmem:[%s2 + $0x4c] sm:$0xf]
  %v1010 = vunpack.c.l.b16 %v687
  %v1011 = vunpack.c.l.b16 %v697
  %v1012 = vunpack.c.l.b16 %v707
  %v1013 = vunpack.c.l.b16 %v717
  %v1014 = vunpack.c.l.b16 %v727
  %v1015 = vunpack.c.l.b16 %v737
  %v1016 = vunpack.c.l.b16 %v747
  %v1017 = vunpack.c.l.b16 %v757
  %v1018 = vunpack.c.l.b16 %v767
  %v1019 = vunpack.c.l.b16 %v777
  %v1020 = vunpack.c.l.b16 %v787
  %v1021 = vunpack.c.l.b16 %v797
  %v1022 = vunpack.c.l.b16 %v807
  %v1023 = vunpack.c.l.b16 %v817
  %v1024 = vunpack.c.l.b16 %v827
  %v1025 = vunpack.c.l.b16 %v837
  %v1026 = vunpack.c.l.b16 %v851
  %v1027 = vunpack.c.l.b16 %v861
  %v1028 = vunpack.c.l.b16 %v871
  %v1029 = vunpack.c.l.b16 %v881
  %v1030 = vunpack.c.l.b16 %v891
  %v1031 = vunpack.c.l.b16 %v901
  %v1032 = vunpack.c.l.b16 %v911
  %v1033 = vunpack.c.l.b16 %v921
  %v1034 = vunpack.c.l.b16 %v931
  %v1035 = vunpack.c.l.b16 %v941
  %v1036 = vunpack.c.l.b16 %v951
  %v1037 = vunpack.c.l.b16 %v961
  %v1038 = vunpack.c.l.b16 %v971
  %v1039 = vunpack.c.l.b16 %v981
  %v1040 = vunpack.c.l.b16 %v991
  %v1041 = vunpack.c.l.b16 %v1001
  %v1042 = vpack.c.b16 %v1011, %v1010
  %v1043 = vpack.c.b16 %v1013, %v1012
  %v1044 = vpack.c.b16 %v1015, %v1014
  %v1045 = vpack.c.b16 %v1017, %v1016
  %v1046 = vpack.c.b16 %v1019, %v1018
  %v1047 = vpack.c.b16 %v1021, %v1020
  %v1048 = vpack.c.b16 %v1023, %v1022
  %v1049 = vpack.c.b16 %v1025, %v1024
  %v1050 = vpack.c.b16 %v1027, %v1026
  %v1051 = vpack.c.b16 %v1029, %v1028
  %v1052 = vpack.c.b16 %v1031, %v1030
  %v1053 = vpack.c.b16 %v1033, %v1032
  %v1054 = vpack.c.b16 %v1035, %v1034
  %v1055 = vpack.c.b16 %v1037, %v1036
  %v1056 = vpack.c.b16 %v1039, %v1038
  %v1057 = vpack.c.b16 %v1041, %v1040
  %v1066 = vunpack.c.l.b16 %v1002
  %v1067 = vunpack.c.l.b16 %v1003
  %v1068 = vunpack.c.l.b16 %v1004
  %v1069 = vunpack.c.l.b16 %v1005
  %v1070 = vunpack.c.l.b16 %v1006
  %v1071 = vunpack.c.l.b16 %v1007
  %v1072 = vunpack.c.l.b16 %v1008
  %v1073 = vunpack.c.l.b16 %v1009
  %v1074 = vpack.c.b16 %v1067, %v1066
  %v1075 = vpack.c.b16 %v1069, %v1068
  %v1076 = vpack.c.b16 %v1071, %v1070
  %v1077 = vpack.c.b16 %v1073, %v1072
  %vm1082 = vcmask 523264
  %v1084 = vsel %vm1082, %v1042, 0
  %v1087 = vsel %vm1082, %v1043, 0
  %v1090 = vsel %vm1082, %v1044, 0
  %v1093 = vsel %vm1082, %v1045, 0
  %v1096 = vsel %vm1082, %v1046, 0
  %v1099 = vsel %vm1082, %v1047, 0
  %v1102 = vsel %vm1082, %v1048, 0
  %v1105 = vsel %vm1082, %v1049, 0
  %v1108 = vsel %vm1082, %v1050, 0
  %v1111 = vsel %vm1082, %v1051, 0
  %v1114 = vsel %vm1082, %v1052, 0
  %v1117 = vsel %vm1082, %v1053, 0
  %v1120 = vsel %vm1082, %v1054, 0
  %v1123 = vsel %vm1082, %v1055, 0
  %v1126 = vsel %vm1082, %v1056, 0
  %v1129 = vsel %vm1082, %v1057, 0
  %1131 = vmatpush.bf16.msra.mxu0 0
  %1132 = vmatpush.bf16.msra.mxu0 0
  %1133 = vmatpush.bf16.msra.mxu0 0
  %1134 = vmatpush.bf16.msra.mxu0 0
  %1135 = vmatpush.bf16.msra.mxu0 %v1077
  %1136 = vmatpush.bf16.msra.mxu0 %v1076
  %1137 = vmatpush.bf16.msra.mxu0 %v1075
  %1138 = vmatpush.bf16.msra.mxu0 %v1074
  %1139 = vmatmul.bf16.gmra.mxu0 %v1084
  %v1140 = vpop.f32.mrf.mxu0
  %v1141 = vadd.f32 0.0, %v1140
  %v1142 = vpop.f32.mrf.mxu0
  %v1143 = vadd.f32 0.0, %v1142
  %1144 = vmatmul.bf16.gmra.mxu0 %v1087
  %v1145 = vpop.f32.mrf.mxu0
  %v1146 = vadd.f32 0.0, %v1145
  %v1147 = vpop.f32.mrf.mxu0
  %v1148 = vadd.f32 0.0, %v1147
  %1149 = vmatmul.bf16.gmra.mxu0 %v1090
  %v1150 = vpop.f32.mrf.mxu0
  %v1151 = vadd.f32 0.0, %v1150
  %v1152 = vpop.f32.mrf.mxu0
  %v1153 = vadd.f32 0.0, %v1152
  %1154 = vmatmul.bf16.gmra.mxu0 %v1093
  %v1155 = vpop.f32.mrf.mxu0
  %v1156 = vadd.f32 0.0, %v1155
  %v1157 = vpop.f32.mrf.mxu0
  %v1158 = vadd.f32 0.0, %v1157
  %1159 = vmatmul.bf16.gmra.mxu0 %v1096
  %v1160 = vpop.f32.mrf.mxu0
  %v1161 = vadd.f32 0.0, %v1160
  %v1162 = vpop.f32.mrf.mxu0
  %v1163 = vadd.f32 0.0, %v1162
  %1164 = vmatmul.bf16.gmra.mxu0 %v1099
  %v1165 = vpop.f32.mrf.mxu0
  %v1166 = vadd.f32 0.0, %v1165
  %v1167 = vpop.f32.mrf.mxu0
  %v1168 = vadd.f32 0.0, %v1167
  %1169 = vmatmul.bf16.gmra.mxu0 %v1102
  %v1170 = vpop.f32.mrf.mxu0
  %v1171 = vadd.f32 0.0, %v1170
  %v1172 = vpop.f32.mrf.mxu0
  %v1173 = vadd.f32 0.0, %v1172
  %1174 = vmatmul.bf16.gmra.mxu0 %v1105
  %v1175 = vpop.f32.mrf.mxu0
  %v1176 = vadd.f32 0.0, %v1175
  %v1177 = vpop.f32.mrf.mxu0
  %v1178 = vadd.f32 0.0, %v1177
  %1179 = vmatmul.bf16.gmra.mxu0 %v1108
  %v1180 = vpop.f32.mrf.mxu0
  %v1181 = vadd.f32 0.0, %v1180
  %v1182 = vpop.f32.mrf.mxu0
  %v1183 = vadd.f32 0.0, %v1182
  %1184 = vmatmul.bf16.gmra.mxu0 %v1111
  %v1185 = vpop.f32.mrf.mxu0
  %v1186 = vadd.f32 0.0, %v1185
  %v1187 = vpop.f32.mrf.mxu0
  %v1188 = vadd.f32 0.0, %v1187
  %1189 = vmatmul.bf16.gmra.mxu0 %v1114
  %v1190 = vpop.f32.mrf.mxu0
  %v1191 = vadd.f32 0.0, %v1190
  %v1192 = vpop.f32.mrf.mxu0
  %v1193 = vadd.f32 0.0, %v1192
  %1194 = vmatmul.bf16.gmra.mxu0 %v1117
  %v1195 = vpop.f32.mrf.mxu0
  %v1196 = vadd.f32 0.0, %v1195
  %v1197 = vpop.f32.mrf.mxu0
  %v1198 = vadd.f32 0.0, %v1197
  %1199 = vmatmul.bf16.gmra.mxu0 %v1120
  %v1200 = vpop.f32.mrf.mxu0
  %v1201 = vadd.f32 0.0, %v1200
  %v1202 = vpop.f32.mrf.mxu0
  %v1203 = vadd.f32 0.0, %v1202
  %1204 = vmatmul.bf16.gmra.mxu0 %v1123
  %v1205 = vpop.f32.mrf.mxu0
  %v1206 = vadd.f32 0.0, %v1205
  %v1207 = vpop.f32.mrf.mxu0
  %v1208 = vadd.f32 0.0, %v1207
  %1209 = vmatmul.bf16.gmra.mxu0 %v1126
  %v1210 = vpop.f32.mrf.mxu0
  %v1211 = vadd.f32 0.0, %v1210
  %v1212 = vpop.f32.mrf.mxu0
  %v1213 = vadd.f32 0.0, %v1212
  %1214 = vmatmul.bf16.gmra.mxu0 %v1129
  %v1215 = vpop.f32.mrf.mxu0
  %v1216 = vadd.f32 0.0, %v1215
  %v1217 = vpop.f32.mrf.mxu0
  %v1218 = vadd.f32 0.0, %v1217
  %1219 = vdwg.mxu0
  %v1252 = vunpack.c.l.b16 %v629
  %v1253 = vunpack.c.l.b16 %v630
  %v1254 = vunpack.c.l.b16 %v631
  %v1255 = vunpack.c.l.b16 %v632
  %v1256 = vunpack.c.l.b16 %v633
  %v1257 = vunpack.c.l.b16 %v634
  %v1258 = vunpack.c.l.b16 %v635
  %v1259 = vunpack.c.l.b16 %v636
  %v1260 = vunpack.c.l.b16 %v637
  %v1261 = vunpack.c.l.b16 %v638
  %v1262 = vunpack.c.l.b16 %v639
  %v1263 = vunpack.c.l.b16 %v640
  %v1264 = vunpack.c.l.b16 %v641
  %v1265 = vunpack.c.l.b16 %v642
  %v1266 = vunpack.c.l.b16 %v643
  %v1267 = vunpack.c.l.b16 %v644
  %v1268 = vunpack.c.l.b16 %v645
  %v1269 = vunpack.c.l.b16 %v646
  %v1270 = vunpack.c.l.b16 %v647
  %v1271 = vunpack.c.l.b16 %v648
  %v1272 = vunpack.c.l.b16 %v649
  %v1273 = vunpack.c.l.b16 %v650
  %v1274 = vunpack.c.l.b16 %v651
  %v1275 = vunpack.c.l.b16 %v652
  %v1276 = vunpack.c.l.b16 %v653
  %v1277 = vunpack.c.l.b16 %v654
  %v1278 = vunpack.c.l.b16 %v655
  %v1279 = vunpack.c.l.b16 %v656
  %v1280 = vunpack.c.l.b16 %v657
  %v1281 = vunpack.c.l.b16 %v658
  %v1282 = vunpack.c.l.b16 %v659
  %v1283 = vunpack.c.l.b16 %v660
  %v1284 = vpack.c.b16 %v1253, %v1252
  %v1285 = vpack.c.b16 %v1255, %v1254
  %v1286 = vpack.c.b16 %v1257, %v1256
  %v1287 = vpack.c.b16 %v1259, %v1258
  %v1288 = vpack.c.b16 %v1261, %v1260
  %v1289 = vpack.c.b16 %v1263, %v1262
  %v1290 = vpack.c.b16 %v1265, %v1264
  %v1291 = vpack.c.b16 %v1267, %v1266
  %v1292 = vpack.c.b16 %v1269, %v1268
  %v1293 = vpack.c.b16 %v1271, %v1270
  %v1294 = vpack.c.b16 %v1273, %v1272
  %v1295 = vpack.c.b16 %v1275, %v1274
  %v1296 = vpack.c.b16 %v1277, %v1276
  %v1297 = vpack.c.b16 %v1279, %v1278
  %v1298 = vpack.c.b16 %v1281, %v1280
  %v1299 = vpack.c.b16 %v1283, %v1282
  %v1308 = vunpack.c.l.b16 %v661
  %v1309 = vunpack.c.l.b16 %v662
  %v1310 = vunpack.c.l.b16 %v663
  %v1311 = vunpack.c.l.b16 %v664
  %v1312 = vunpack.c.l.b16 %v665
  %v1313 = vunpack.c.l.b16 %v666
  %v1314 = vunpack.c.l.b16 %v667
  %v1315 = vunpack.c.l.b16 %v668
  %v1316 = vpack.c.b16 %v1309, %v1308
  %v1317 = vpack.c.b16 %v1311, %v1310
  %v1318 = vpack.c.b16 %v1313, %v1312
  %v1319 = vpack.c.b16 %v1315, %v1314
  %v1325 = vsel %vm1082, %v1284, 0
  %v1328 = vsel %vm1082, %v1285, 0
  %v1331 = vsel %vm1082, %v1286, 0
  %v1334 = vsel %vm1082, %v1287, 0
  %v1337 = vsel %vm1082, %v1288, 0
  %v1340 = vsel %vm1082, %v1289, 0
  %v1343 = vsel %vm1082, %v1290, 0
  %v1346 = vsel %vm1082, %v1291, 0
  %v1349 = vsel %vm1082, %v1292, 0
  %v1352 = vsel %vm1082, %v1293, 0
  %v1355 = vsel %vm1082, %v1294, 0
  %v1358 = vsel %vm1082, %v1295, 0
  %v1361 = vsel %vm1082, %v1296, 0
  %v1364 = vsel %vm1082, %v1297, 0
  %v1367 = vsel %vm1082, %v1298, 0
  %v1370 = vsel %vm1082, %v1299, 0
  %1372 = vmatpush.bf16.msra.mxu0 0
  %1373 = vmatpush.bf16.msra.mxu0 0
  %1374 = vmatpush.bf16.msra.mxu0 0
  %1375 = vmatpush.bf16.msra.mxu0 0
  %1376 = vmatpush.bf16.msra.mxu0 %v1319
  %1377 = vmatpush.bf16.msra.mxu0 %v1318
  %1378 = vmatpush.bf16.msra.mxu0 %v1317
  %1379 = vmatpush.bf16.msra.mxu0 %v1316
  %1380 = vmatmul.bf16.gmra.mxu0 %v1325
  %v1381 = vpop.f32.mrf.mxu0
  %v1382 = vadd.f32 %v1141, %v1381
  %v1383 = vpop.f32.mrf.mxu0
  %v1384 = vadd.f32 %v1143, %v1383
  %1385 = vmatmul.bf16.gmra.mxu0 %v1328
  %v1386 = vpop.f32.mrf.mxu0
  %v1387 = vadd.f32 %v1146, %v1386
  %v1388 = vpop.f32.mrf.mxu0
  %v1389 = vadd.f32 %v1148, %v1388
  %1390 = vmatmul.bf16.gmra.mxu0 %v1331
  %v1391 = vpop.f32.mrf.mxu0
  %v1392 = vadd.f32 %v1151, %v1391
  %v1393 = vpop.f32.mrf.mxu0
  %v1394 = vadd.f32 %v1153, %v1393
  %1395 = vmatmul.bf16.gmra.mxu0 %v1334
  %v1396 = vpop.f32.mrf.mxu0
  %v1397 = vadd.f32 %v1156, %v1396
  %v1398 = vpop.f32.mrf.mxu0
  %v1399 = vadd.f32 %v1158, %v1398
  %1400 = vmatmul.bf16.gmra.mxu0 %v1337
  %v1401 = vpop.f32.mrf.mxu0
  %v1402 = vadd.f32 %v1161, %v1401
  %v1403 = vpop.f32.mrf.mxu0
  %v1404 = vadd.f32 %v1163, %v1403
  %1405 = vmatmul.bf16.gmra.mxu0 %v1340
  %v1406 = vpop.f32.mrf.mxu0
  %v1407 = vadd.f32 %v1166, %v1406
  %v1408 = vpop.f32.mrf.mxu0
  %v1409 = vadd.f32 %v1168, %v1408
  %1410 = vmatmul.bf16.gmra.mxu0 %v1343
  %v1411 = vpop.f32.mrf.mxu0
  %v1412 = vadd.f32 %v1171, %v1411
  %v1413 = vpop.f32.mrf.mxu0
  %v1414 = vadd.f32 %v1173, %v1413
  %1415 = vmatmul.bf16.gmra.mxu0 %v1346
  %v1416 = vpop.f32.mrf.mxu0
  %v1417 = vadd.f32 %v1176, %v1416
  %v1418 = vpop.f32.mrf.mxu0
  %v1419 = vadd.f32 %v1178, %v1418
  %1420 = vmatmul.bf16.gmra.mxu0 %v1349
  %v1421 = vpop.f32.mrf.mxu0
  %v1422 = vadd.f32 %v1181, %v1421
  %v1423 = vpop.f32.mrf.mxu0
  %v1424 = vadd.f32 %v1183, %v1423
  %1425 = vmatmul.bf16.gmra.mxu0 %v1352
  %v1426 = vpop.f32.mrf.mxu0
  %v1427 = vadd.f32 %v1186, %v1426
  %v1428 = vpop.f32.mrf.mxu0
  %v1429 = vadd.f32 %v1188, %v1428
  %1430 = vmatmul.bf16.gmra.mxu0 %v1355
  %v1431 = vpop.f32.mrf.mxu0
  %v1432 = vadd.f32 %v1191, %v1431
  %v1433 = vpop.f32.mrf.mxu0
  %v1434 = vadd.f32 %v1193, %v1433
  %1435 = vmatmul.bf16.gmra.mxu0 %v1358
  %v1436 = vpop.f32.mrf.mxu0
  %v1437 = vadd.f32 %v1196, %v1436
  %v1438 = vpop.f32.mrf.mxu0
  %v1439 = vadd.f32 %v1198, %v1438
  %1440 = vmatmul.bf16.gmra.mxu0 %v1361
  %v1441 = vpop.f32.mrf.mxu0
  %v1442 = vadd.f32 %v1201, %v1441
  %v1443 = vpop.f32.mrf.mxu0
  %v1444 = vadd.f32 %v1203, %v1443
  %1445 = vmatmul.bf16.gmra.mxu0 %v1364
  %v1446 = vpop.f32.mrf.mxu0
  %v1447 = vadd.f32 %v1206, %v1446
  %v1448 = vpop.f32.mrf.mxu0
  %v1449 = vadd.f32 %v1208, %v1448
  %1450 = vmatmul.bf16.gmra.mxu0 %v1367
  %v1451 = vpop.f32.mrf.mxu0
  %v1452 = vadd.f32 %v1211, %v1451
  %v1453 = vpop.f32.mrf.mxu0
  %v1454 = vadd.f32 %v1213, %v1453
  %1455 = vmatmul.bf16.gmra.mxu0 %v1370
  %v1456 = vpop.f32.mrf.mxu0
  %v1457 = vadd.f32 %v1216, %v1456
  %v1458 = vpop.f32.mrf.mxu0
  %v1459 = vadd.f32 %v1218, %v1458
  %1460 = vdwg.mxu0
  %v1461 = vld [vmem:[#allocation2 + $0x8] sm:$0xf]
  %v1462 = vld [vmem:[#allocation2 + $0xc] sm:$0xf]
  %v1463 = vld [vmem:[#allocation2 + $0x10] sm:$0xf]
  %v1464 = vld [vmem:[#allocation2 + $0x14] sm:$0xf]
  %v1465 = vld [vmem:[#allocation2 + $0x18] sm:$0xf]
  %v1466 = vld [vmem:[#allocation2 + $0x1c] sm:$0xf]
  %v1467 = vld [vmem:[#allocation2 + $0x20] sm:$0xf]
  %v1468 = vld [vmem:[#allocation2 + $0x24] sm:$0xf]
  %v1469 = vld [vmem:[#allocation2 + $0x28] sm:$0xf]
  %v1470 = vld [vmem:[#allocation2 + $0x2c] sm:$0xf]
  %v1471 = vld [vmem:[#allocation2 + $0x30] sm:$0xf]
  %v1472 = vld [vmem:[#allocation2 + $0x34] sm:$0xf]
  %v1473 = vld [vmem:[#allocation2 + $0x38] sm:$0xf]
  %v1474 = vld [vmem:[#allocation2 + $0x3c] sm:$0xf]
  %v1475 = vld [vmem:[#allocation2 + $0x40] sm:$0xf]
  %v1476 = vld [vmem:[#allocation2 + $0x44] sm:$0xf]
  %v1477 = vld [vmem:[#allocation2 + $0x58] sm:$0xf]
  %v1478 = vld [vmem:[#allocation2 + $0x5c] sm:$0xf]
  %v1479 = vld [vmem:[#allocation2 + $0x60] sm:$0xf]
  %v1480 = vld [vmem:[#allocation2 + $0x64] sm:$0xf]
  %v1481 = vld [vmem:[#allocation2 + $0x68] sm:$0xf]
  %v1482 = vld [vmem:[#allocation2 + $0x6c] sm:$0xf]
  %v1483 = vld [vmem:[#allocation2 + $0x70] sm:$0xf]
  %v1484 = vld [vmem:[#allocation2 + $0x74] sm:$0xf]
  %v1485 = vld [vmem:[#allocation2 + $0x78] sm:$0xf]
  %v1486 = vld [vmem:[#allocation2 + $0x7c] sm:$0xf]
  %v1487 = vld [vmem:[#allocation2 + $0x80] sm:$0xf]
  %v1488 = vld [vmem:[#allocation2 + $0x84] sm:$0xf]
  %v1489 = vld [vmem:[#allocation2 + $0x88] sm:$0xf]
  %v1490 = vld [vmem:[#allocation2 + $0x8c] sm:$0xf]
  %v1491 = vld [vmem:[#allocation2 + $0x90] sm:$0xf]
  %v1492 = vld [vmem:[#allocation2 + $0x94] sm:$0xf]
  %v1493 = vld [vmem:[%s2 + $0x50] sm:$0xf]
  %v1494 = vld [vmem:[%s2 + $0x54] sm:$0xf]
  %v1495 = vld [vmem:[%s2 + $0x58] sm:$0xf]
  %v1496 = vld [vmem:[%s2 + $0x5c] sm:$0xf]
  %v1497 = vld [vmem:[%s2 + $0x60] sm:$0xf]
  %v1498 = vld [vmem:[%s2 + $0x64] sm:$0xf]
  %v1499 = vld [vmem:[%s2 + $0x68] sm:$0xf]
  %v1500 = vld [vmem:[%s2 + $0x6c] sm:$0xf]
  %v1533 = vunpack.c.l.b16 %v1461
  %v1534 = vunpack.c.l.b16 %v1462
  %v1535 = vunpack.c.l.b16 %v1463
  %v1536 = vunpack.c.l.b16 %v1464
  %v1537 = vunpack.c.l.b16 %v1465
  %v1538 = vunpack.c.l.b16 %v1466
  %v1539 = vunpack.c.l.b16 %v1467
  %v1540 = vunpack.c.l.b16 %v1468
  %v1541 = vunpack.c.l.b16 %v1469
  %v1542 = vunpack.c.l.b16 %v1470
  %v1543 = vunpack.c.l.b16 %v1471
  %v1544 = vunpack.c.l.b16 %v1472
  %v1545 = vunpack.c.l.b16 %v1473
  %v1546 = vunpack.c.l.b16 %v1474
  %v1547 = vunpack.c.l.b16 %v1475
  %v1548 = vunpack.c.l.b16 %v1476
  %v1549 = vunpack.c.l.b16 %v1477
  %v1550 = vunpack.c.l.b16 %v1478
  %v1551 = vunpack.c.l.b16 %v1479
  %v1552 = vunpack.c.l.b16 %v1480
  %v1553 = vunpack.c.l.b16 %v1481
  %v1554 = vunpack.c.l.b16 %v1482
  %v1555 = vunpack.c.l.b16 %v1483
  %v1556 = vunpack.c.l.b16 %v1484
  %v1557 = vunpack.c.l.b16 %v1485
  %v1558 = vunpack.c.l.b16 %v1486
  %v1559 = vunpack.c.l.b16 %v1487
  %v1560 = vunpack.c.l.b16 %v1488
  %v1561 = vunpack.c.l.b16 %v1489
  %v1562 = vunpack.c.l.b16 %v1490
  %v1563 = vunpack.c.l.b16 %v1491
  %v1564 = vunpack.c.l.b16 %v1492
  %v1565 = vpack.c.b16 %v1534, %v1533
  %v1566 = vpack.c.b16 %v1536, %v1535
  %v1567 = vpack.c.b16 %v1538, %v1537
  %v1568 = vpack.c.b16 %v1540, %v1539
  %v1569 = vpack.c.b16 %v1542, %v1541
  %v1570 = vpack.c.b16 %v1544, %v1543
  %v1571 = vpack.c.b16 %v1546, %v1545
  %v1572 = vpack.c.b16 %v1548, %v1547
  %v1573 = vpack.c.b16 %v1550, %v1549
  %v1574 = vpack.c.b16 %v1552, %v1551
  %v1575 = vpack.c.b16 %v1554, %v1553
  %v1576 = vpack.c.b16 %v1556, %v1555
  %v1577 = vpack.c.b16 %v1558, %v1557
  %v1578 = vpack.c.b16 %v1560, %v1559
  %v1579 = vpack.c.b16 %v1562, %v1561
  %v1580 = vpack.c.b16 %v1564, %v1563
  %v1589 = vunpack.c.l.b16 %v1493
  %v1590 = vunpack.c.l.b16 %v1494
  %v1591 = vunpack.c.l.b16 %v1495
  %v1592 = vunpack.c.l.b16 %v1496
  %v1593 = vunpack.c.l.b16 %v1497
  %v1594 = vunpack.c.l.b16 %v1498
  %v1595 = vunpack.c.l.b16 %v1499
  %v1596 = vunpack.c.l.b16 %v1500
  %v1597 = vpack.c.b16 %v1590, %v1589
  %v1598 = vpack.c.b16 %v1592, %v1591
  %v1599 = vpack.c.b16 %v1594, %v1593
  %v1600 = vpack.c.b16 %v1596, %v1595
  %v1606 = vsel %vm1082, %v1565, 0
  %v1609 = vsel %vm1082, %v1566, 0
  %v1612 = vsel %vm1082, %v1567, 0
  %v1615 = vsel %vm1082, %v1568, 0
  %v1618 = vsel %vm1082, %v1569, 0
  %v1621 = vsel %vm1082, %v1570, 0
  %v1624 = vsel %vm1082, %v1571, 0
  %v1627 = vsel %vm1082, %v1572, 0
  %v1630 = vsel %vm1082, %v1573, 0
  %v1633 = vsel %vm1082, %v1574, 0
  %v1636 = vsel %vm1082, %v1575, 0
  %v1639 = vsel %vm1082, %v1576, 0
  %v1642 = vsel %vm1082, %v1577, 0
  %v1645 = vsel %vm1082, %v1578, 0
  %v1648 = vsel %vm1082, %v1579, 0
  %v1651 = vsel %vm1082, %v1580, 0
  %1653 = vmatpush.bf16.msra.mxu0 0
  %1654 = vmatpush.bf16.msra.mxu0 0
  %1655 = vmatpush.bf16.msra.mxu0 0
  %1656 = vmatpush.bf16.msra.mxu0 0
  %1657 = vmatpush.bf16.msra.mxu0 %v1600
  %1658 = vmatpush.bf16.msra.mxu0 %v1599
  %1659 = vmatpush.bf16.msra.mxu0 %v1598
  %1660 = vmatpush.bf16.msra.mxu0 %v1597
  %1661 = vmatmul.bf16.gmra.mxu0 %v1606
  %v1662 = vpop.f32.mrf.mxu0
  %v1663 = vadd.f32 0.0, %v1662
  %v1664 = vpop.f32.mrf.mxu0
  %v1665 = vadd.f32 0.0, %v1664
  %1666 = vmatmul.bf16.gmra.mxu0 %v1609
  %v1667 = vpop.f32.mrf.mxu0
  %v1668 = vadd.f32 0.0, %v1667
  %v1669 = vpop.f32.mrf.mxu0
  %v1670 = vadd.f32 0.0, %v1669
  %1671 = vmatmul.bf16.gmra.mxu0 %v1612
  %v1672 = vpop.f32.mrf.mxu0
  %v1673 = vadd.f32 0.0, %v1672
  %v1674 = vpop.f32.mrf.mxu0
  %v1675 = vadd.f32 0.0, %v1674
  %1676 = vmatmul.bf16.gmra.mxu0 %v1615
  %v1677 = vpop.f32.mrf.mxu0
  %v1678 = vadd.f32 0.0, %v1677
  %v1679 = vpop.f32.mrf.mxu0
  %v1680 = vadd.f32 0.0, %v1679
  %1681 = vmatmul.bf16.gmra.mxu0 %v1618
  %v1682 = vpop.f32.mrf.mxu0
  %v1683 = vadd.f32 0.0, %v1682
  %v1684 = vpop.f32.mrf.mxu0
  %v1685 = vadd.f32 0.0, %v1684
  %1686 = vmatmul.bf16.gmra.mxu0 %v1621
  %v1687 = vpop.f32.mrf.mxu0
  %v1688 = vadd.f32 0.0, %v1687
  %v1689 = vpop.f32.mrf.mxu0
  %v1690 = vadd.f32 0.0, %v1689
  %1691 = vmatmul.bf16.gmra.mxu0 %v1624
  %v1692 = vpop.f32.mrf.mxu0
  %v1693 = vadd.f32 0.0, %v1692
  %v1694 = vpop.f32.mrf.mxu0
  %v1695 = vadd.f32 0.0, %v1694
  %1696 = vmatmul.bf16.gmra.mxu0 %v1627
  %v1697 = vpop.f32.mrf.mxu0
  %v1698 = vadd.f32 0.0, %v1697
  %v1699 = vpop.f32.mrf.mxu0
  %v1700 = vadd.f32 0.0, %v1699
  %1701 = vmatmul.bf16.gmra.mxu0 %v1630
  %v1702 = vpop.f32.mrf.mxu0
  %v1703 = vadd.f32 0.0, %v1702
  %v1704 = vpop.f32.mrf.mxu0
  %v1705 = vadd.f32 0.0, %v1704
  %1706 = vmatmul.bf16.gmra.mxu0 %v1633
  %v1707 = vpop.f32.mrf.mxu0
  %v1708 = vadd.f32 0.0, %v1707
  %v1709 = vpop.f32.mrf.mxu0
  %v1710 = vadd.f32 0.0, %v1709
  %1711 = vmatmul.bf16.gmra.mxu0 %v1636
  %v1712 = vpop.f32.mrf.mxu0
  %v1713 = vadd.f32 0.0, %v1712
  %v1714 = vpop.f32.mrf.mxu0
  %v1715 = vadd.f32 0.0, %v1714
  %1716 = vmatmul.bf16.gmra.mxu0 %v1639
  %v1717 = vpop.f32.mrf.mxu0
  %v1718 = vadd.f32 0.0, %v1717
  %v1719 = vpop.f32.mrf.mxu0
  %v1720 = vadd.f32 0.0, %v1719
  %1721 = vmatmul.bf16.gmra.mxu0 %v1642
  %v1722 = vpop.f32.mrf.mxu0
  %v1723 = vadd.f32 0.0, %v1722
  %v1724 = vpop.f32.mrf.mxu0
  %v1725 = vadd.f32 0.0, %v1724
  %1726 = vmatmul.bf16.gmra.mxu0 %v1645
  %v1727 = vpop.f32.mrf.mxu0
  %v1728 = vadd.f32 0.0, %v1727
  %v1729 = vpop.f32.mrf.mxu0
  %v1730 = vadd.f32 0.0, %v1729
  %1731 = vmatmul.bf16.gmra.mxu0 %v1648
  %v1732 = vpop.f32.mrf.mxu0
  %v1733 = vadd.f32 0.0, %v1732
  %v1734 = vpop.f32.mrf.mxu0
  %v1735 = vadd.f32 0.0, %v1734
  %1736 = vmatmul.bf16.gmra.mxu0 %v1651
  %v1737 = vpop.f32.mrf.mxu0
  %v1738 = vadd.f32 0.0, %v1737
  %v1739 = vpop.f32.mrf.mxu0
  %v1740 = vadd.f32 0.0, %v1739
  %1741 = vdwg.mxu0
  %v1742 = vadd.f32 %v1382, %v1663
  %v1743 = vadd.f32 %v1384, %v1665
  %v1744 = vadd.f32 %v1387, %v1668
  %v1745 = vadd.f32 %v1389, %v1670
  %v1746 = vadd.f32 %v1392, %v1673
  %v1747 = vadd.f32 %v1394, %v1675
  %v1748 = vadd.f32 %v1397, %v1678
  %v1749 = vadd.f32 %v1399, %v1680
  %v1750 = vadd.f32 %v1402, %v1683
  %v1751 = vadd.f32 %v1404, %v1685
  %v1752 = vadd.f32 %v1407, %v1688
  %v1753 = vadd.f32 %v1409, %v1690
  %v1754 = vadd.f32 %v1412, %v1693
  %v1755 = vadd.f32 %v1414, %v1695
  %v1756 = vadd.f32 %v1417, %v1698
  %v1757 = vadd.f32 %v1419, %v1700
  %v1758 = vadd.f32 %v1422, %v1703
  %v1759 = vadd.f32 %v1424, %v1705
  %v1760 = vadd.f32 %v1427, %v1708
  %v1761 = vadd.f32 %v1429, %v1710
  %v1762 = vadd.f32 %v1432, %v1713
  %v1763 = vadd.f32 %v1434, %v1715
  %v1764 = vadd.f32 %v1437, %v1718
  %v1765 = vadd.f32 %v1439, %v1720
  %v1766 = vadd.f32 %v1442, %v1723
  %v1767 = vadd.f32 %v1444, %v1725
  %v1768 = vadd.f32 %v1447, %v1728
  %v1769 = vadd.f32 %v1449, %v1730
  %v1770 = vadd.f32 %v1452, %v1733
  %v1771 = vadd.f32 %v1454, %v1735
  %v1772 = vadd.f32 %v1457, %v1738
  %v1773 = vadd.f32 %v1459, %v1740
  %v1774 = vld [vmem:[#allocation2 + $0x8] sm:$0xf]
  %v1775 = vld [vmem:[#allocation2 + $0xc] sm:$0xf]
  %v1776 = vld [vmem:[#allocation2 + $0x10] sm:$0xf]
  %v1777 = vld [vmem:[#allocation2 + $0x14] sm:$0xf]
  %v1778 = vld [vmem:[#allocation2 + $0x18] sm:$0xf]
  %v1779 = vld [vmem:[#allocation2 + $0x1c] sm:$0xf]
  %v1780 = vld [vmem:[#allocation2 + $0x20] sm:$0xf]
  %v1781 = vld [vmem:[#allocation2 + $0x24] sm:$0xf]
  %v1782 = vld [vmem:[#allocation2 + $0x28] sm:$0xf]
  %v1783 = vld [vmem:[#allocation2 + $0x2c] sm:$0xf]
  %v1784 = vld [vmem:[#allocation2 + $0x30] sm:$0xf]
  %v1785 = vld [vmem:[#allocation2 + $0x34] sm:$0xf]
  %v1786 = vld [vmem:[#allocation2 + $0x38] sm:$0xf]
  %v1787 = vld [vmem:[#allocation2 + $0x3c] sm:$0xf]
  %v1788 = vld [vmem:[#allocation2 + $0x40] sm:$0xf]
  %v1789 = vld [vmem:[#allocation2 + $0x44] sm:$0xf]
  %v1790 = vld [vmem:[#allocation2 + $0x48] sm:$0x1]
  %v1791 = vld [vmem:[#allocation2 + $0x58] sm:$0xf]
  %v1792 = vld [vmem:[#allocation2 + $0x5c] sm:$0xf]
  %v1793 = vld [vmem:[#allocation2 + $0x60] sm:$0xf]
  %v1794 = vld [vmem:[#allocation2 + $0x64] sm:$0xf]
  %v1795 = vld [vmem:[#allocation2 + $0x68] sm:$0xf]
  %v1796 = vld [vmem:[#allocation2 + $0x6c] sm:$0xf]
  %v1797 = vld [vmem:[#allocation2 + $0x70] sm:$0xf]
  %v1798 = vld [vmem:[#allocation2 + $0x74] sm:$0xf]
  %v1799 = vld [vmem:[#allocation2 + $0x78] sm:$0xf]
  %v1800 = vld [vmem:[#allocation2 + $0x7c] sm:$0xf]
  %v1801 = vld [vmem:[#allocation2 + $0x80] sm:$0xf]
  %v1802 = vld [vmem:[#allocation2 + $0x84] sm:$0xf]
  %v1803 = vld [vmem:[#allocation2 + $0x88] sm:$0xf]
  %v1804 = vld [vmem:[#allocation2 + $0x8c] sm:$0xf]
  %v1805 = vld [vmem:[#allocation2 + $0x90] sm:$0xf]
  %v1806 = vld [vmem:[#allocation2 + $0x94] sm:$0xf]
  %v1807 = vld [vmem:[#allocation2 + $0x98] sm:$0x1]
  %v1809 = vshrl.u32 %v1774, 16
  %v1811 = vrot.slane %v1809, 4
  %v1812 = vshll.u32 %v1774, 16
  %v1814 = vrot.slane %v1812, 5
  %v1815 = vor.u32 %v1811, %v1814
  %v1816 = vrot.slane %v1815, 4
  %v1818 = vshll.u32 %v1775, 16
  %v1820 = vrot.slane %v1818, 5
  %v1821 = vsel %vm673, %v1816, %v1820
  %v1822 = vshrl.u32 %v1775, 16
  %v1824 = vrot.slane %v1822, 4
  %v1825 = vor.u32 %v1824, %v1820
  %v1826 = vrot.slane %v1825, 4
  %v1828 = vshll.u32 %v1776, 16
  %v1830 = vrot.slane %v1828, 5
  %v1831 = vsel %vm673, %v1826, %v1830
  %v1832 = vshrl.u32 %v1776, 16
  %v1834 = vrot.slane %v1832, 4
  %v1835 = vor.u32 %v1834, %v1830
  %v1836 = vrot.slane %v1835, 4
  %v1838 = vshll.u32 %v1777, 16
  %v1840 = vrot.slane %v1838, 5
  %v1841 = vsel %vm673, %v1836, %v1840
  %v1842 = vshrl.u32 %v1777, 16
  %v1844 = vrot.slane %v1842, 4
  %v1845 = vor.u32 %v1844, %v1840
  %v1846 = vrot.slane %v1845, 4
  %v1848 = vshll.u32 %v1778, 16
  %v1850 = vrot.slane %v1848, 5
  %v1851 = vsel %vm673, %v1846, %v1850
  %v1852 = vshrl.u32 %v1778, 16
  %v1854 = vrot.slane %v1852, 4
  %v1855 = vor.u32 %v1854, %v1850
  %v1856 = vrot.slane %v1855, 4
  %v1858 = vshll.u32 %v1779, 16
  %v1860 = vrot.slane %v1858, 5
  %v1861 = vsel %vm673, %v1856, %v1860
  %v1862 = vshrl.u32 %v1779, 16
  %v1864 = vrot.slane %v1862, 4
  %v1865 = vor.u32 %v1864, %v1860
  %v1866 = vrot.slane %v1865, 4
  %v1868 = vshll.u32 %v1780, 16
  %v1870 = vrot.slane %v1868, 5
  %v1871 = vsel %vm673, %v1866, %v1870
  %v1872 = vshrl.u32 %v1780, 16
  %v1874 = vrot.slane %v1872, 4
  %v1875 = vor.u32 %v1874, %v1870
  %v1876 = vrot.slane %v1875, 4
  %v1878 = vshll.u32 %v1781, 16
  %v1880 = vrot.slane %v1878, 5
  %v1881 = vsel %vm673, %v1876, %v1880
  %v1882 = vshrl.u32 %v1781, 16
  %v1884 = vrot.slane %v1882, 4
  %v1885 = vor.u32 %v1884, %v1880
  %v1886 = vrot.slane %v1885, 4
  %v1888 = vshll.u32 %v1782, 16
  %v1890 = vrot.slane %v1888, 5
  %v1891 = vsel %vm673, %v1886, %v1890
  %v1892 = vshrl.u32 %v1782, 16
  %v1894 = vrot.slane %v1892, 4
  %v1895 = vor.u32 %v1894, %v1890
  %v1896 = vrot.slane %v1895, 4
  %v1898 = vshll.u32 %v1783, 16
  %v1900 = vrot.slane %v1898, 5
  %v1901 = vsel %vm673, %v1896, %v1900
  %v1902 = vshrl.u32 %v1783, 16
  %v1904 = vrot.slane %v1902, 4
  %v1905 = vor.u32 %v1904, %v1900
  %v1906 = vrot.slane %v1905, 4
  %v1908 = vshll.u32 %v1784, 16
  %v1910 = vrot.slane %v1908, 5
  %v1911 = vsel %vm673, %v1906, %v1910
  %v1912 = vshrl.u32 %v1784, 16
  %v1914 = vrot.slane %v1912, 4
  %v1915 = vor.u32 %v1914, %v1910
  %v1916 = vrot.slane %v1915, 4
  %v1918 = vshll.u32 %v1785, 16
  %v1920 = vrot.slane %v1918, 5
  %v1921 = vsel %vm673, %v1916, %v1920
  %v1922 = vshrl.u32 %v1785, 16
  %v1924 = vrot.slane %v1922, 4
  %v1925 = vor.u32 %v1924, %v1920
  %v1926 = vrot.slane %v1925, 4
  %v1928 = vshll.u32 %v1786, 16
  %v1930 = vrot.slane %v1928, 5
  %v1931 = vsel %vm673, %v1926, %v1930
  %v1932 = vshrl.u32 %v1786, 16
  %v1934 = vrot.slane %v1932, 4
  %v1935 = vor.u32 %v1934, %v1930
  %v1936 = vrot.slane %v1935, 4
  %v1938 = vshll.u32 %v1787, 16
  %v1940 = vrot.slane %v1938, 5
  %v1941 = vsel %vm673, %v1936, %v1940
  %v1942 = vshrl.u32 %v1787, 16
  %v1944 = vrot.slane %v1942, 4
  %v1945 = vor.u32 %v1944, %v1940
  %v1946 = vrot.slane %v1945, 4
  %v1948 = vshll.u32 %v1788, 16
  %v1950 = vrot.slane %v1948, 5
  %v1951 = vsel %vm673, %v1946, %v1950
  %v1952 = vshrl.u32 %v1788, 16
  %v1954 = vrot.slane %v1952, 4
  %v1955 = vor.u32 %v1954, %v1950
  %v1956 = vrot.slane %v1955, 4
  %v1958 = vshll.u32 %v1789, 16
  %v1960 = vrot.slane %v1958, 5
  %v1961 = vsel %vm673, %v1956, %v1960
  %v1962 = vshrl.u32 %v1789, 16
  %v1964 = vrot.slane %v1962, 4
  %v1965 = vor.u32 %v1964, %v1960
  %v1966 = vrot.slane %v1965, 4
  %v1968 = vshll.u32 %v1790, 16
  %v1970 = vrot.slane %v1968, 5
  %v1971 = vsel %vm673, %v1966, %v1970
  %v1973 = vshrl.u32 %v1791, 16
  %v1975 = vrot.slane %v1973, 4
  %v1976 = vshll.u32 %v1791, 16
  %v1978 = vrot.slane %v1976, 5
  %v1979 = vor.u32 %v1975, %v1978
  %v1980 = vrot.slane %v1979, 4
  %v1982 = vshll.u32 %v1792, 16
  %v1984 = vrot.slane %v1982, 5
  %v1985 = vsel %vm673, %v1980, %v1984
  %v1986 = vshrl.u32 %v1792, 16
  %v1988 = vrot.slane %v1986, 4
  %v1989 = vor.u32 %v1988, %v1984
  %v1990 = vrot.slane %v1989, 4
  %v1992 = vshll.u32 %v1793, 16
  %v1994 = vrot.slane %v1992, 5
  %v1995 = vsel %vm673, %v1990, %v1994
  %v1996 = vshrl.u32 %v1793, 16
  %v1998 = vrot.slane %v1996, 4
  %v1999 = vor.u32 %v1998, %v1994
  %v2000 = vrot.slane %v1999, 4
  %v2002 = vshll.u32 %v1794, 16
  %v2004 = vrot.slane %v2002, 5
  %v2005 = vsel %vm673, %v2000, %v2004
  %v2006 = vshrl.u32 %v1794, 16
  %v2008 = vrot.slane %v2006, 4
  %v2009 = vor.u32 %v2008, %v2004
  %v2010 = vrot.slane %v2009, 4
  %v2012 = vshll.u32 %v1795, 16
  %v2014 = vrot.slane %v2012, 5
  %v2015 = vsel %vm673, %v2010, %v2014
  %v2016 = vshrl.u32 %v1795, 16
  %v2018 = vrot.slane %v2016, 4
  %v2019 = vor.u32 %v2018, %v2014
  %v2020 = vrot.slane %v2019, 4
  %v2022 = vshll.u32 %v1796, 16
  %v2024 = vrot.slane %v2022, 5
  %v2025 = vsel %vm673, %v2020, %v2024
  %v2026 = vshrl.u32 %v1796, 16
  %v2028 = vrot.slane %v2026, 4
  %v2029 = vor.u32 %v2028, %v2024
  %v2030 = vrot.slane %v2029, 4
  %v2032 = vshll.u32 %v1797, 16
  %v2034 = vrot.slane %v2032, 5
  %v2035 = vsel %vm673, %v2030, %v2034
  %v2036 = vshrl.u32 %v1797, 16
  %v2038 = vrot.slane %v2036, 4
  %v2039 = vor.u32 %v2038, %v2034
  %v2040 = vrot.slane %v2039, 4
  %v2042 = vshll.u32 %v1798, 16
  %v2044 = vrot.slane %v2042, 5
  %v2045 = vsel %vm673, %v2040, %v2044
  %v2046 = vshrl.u32 %v1798, 16
  %v2048 = vrot.slane %v2046, 4
  %v2049 = vor.u32 %v2048, %v2044
  %v2050 = vrot.slane %v2049, 4
  %v2052 = vshll.u32 %v1799, 16
  %v2054 = vrot.slane %v2052, 5
  %v2055 = vsel %vm673, %v2050, %v2054
  %v2056 = vshrl.u32 %v1799, 16
  %v2058 = vrot.slane %v2056, 4
  %v2059 = vor.u32 %v2058, %v2054
  %v2060 = vrot.slane %v2059, 4
  %v2062 = vshll.u32 %v1800, 16
  %v2064 = vrot.slane %v2062, 5
  %v2065 = vsel %vm673, %v2060, %v2064
  %v2066 = vshrl.u32 %v1800, 16
  %v2068 = vrot.slane %v2066, 4
  %v2069 = vor.u32 %v2068, %v2064
  %v2070 = vrot.slane %v2069, 4
  %v2072 = vshll.u32 %v1801, 16
  %v2074 = vrot.slane %v2072, 5
  %v2075 = vsel %vm673, %v2070, %v2074
  %v2076 = vshrl.u32 %v1801, 16
  %v2078 = vrot.slane %v2076, 4
  %v2079 = vor.u32 %v2078, %v2074
  %v2080 = vrot.slane %v2079, 4
  %v2082 = vshll.u32 %v1802, 16
  %v2084 = vrot.slane %v2082, 5
  %v2085 = vsel %vm673, %v2080, %v2084
  %v2086 = vshrl.u32 %v1802, 16
  %v2088 = vrot.slane %v2086, 4
  %v2089 = vor.u32 %v2088, %v2084
  %v2090 = vrot.slane %v2089, 4
  %v2092 = vshll.u32 %v1803, 16
  %v2094 = vrot.slane %v2092, 5
  %v2095 = vsel %vm673, %v2090, %v2094
  %v2096 = vshrl.u32 %v1803, 16
  %v2098 = vrot.slane %v2096, 4
  %v2099 = vor.u32 %v2098, %v2094
  %v2100 = vrot.slane %v2099, 4
  %v2102 = vshll.u32 %v1804, 16
  %v2104 = vrot.slane %v2102, 5
  %v2105 = vsel %vm673, %v2100, %v2104
  %v2106 = vshrl.u32 %v1804, 16
  %v2108 = vrot.slane %v2106, 4
  %v2109 = vor.u32 %v2108, %v2104
  %v2110 = vrot.slane %v2109, 4
  %v2112 = vshll.u32 %v1805, 16
  %v2114 = vrot.slane %v2112, 5
  %v2115 = vsel %vm673, %v2110, %v2114
  %v2116 = vshrl.u32 %v1805, 16
  %v2118 = vrot.slane %v2116, 4
  %v2119 = vor.u32 %v2118, %v2114
  %v2120 = vrot.slane %v2119, 4
  %v2122 = vshll.u32 %v1806, 16
  %v2124 = vrot.slane %v2122, 5
  %v2125 = vsel %vm673, %v2120, %v2124
  %v2126 = vshrl.u32 %v1806, 16
  %v2128 = vrot.slane %v2126, 4
  %v2129 = vor.u32 %v2128, %v2124
  %v2130 = vrot.slane %v2129, 4
  %v2132 = vshll.u32 %v1807, 16
  %v2134 = vrot.slane %v2132, 5
  %v2135 = vsel %vm673, %v2130, %v2134
  %v2136 = vld [vmem:[%s2 + $0x70] sm:$0xf]
  %v2137 = vld [vmem:[%s2 + $0x74] sm:$0xf]
  %v2138 = vld [vmem:[%s2 + $0x78] sm:$0xf]
  %v2139 = vld [vmem:[%s2 + $0x7c] sm:$0xf]
  %v2140 = vld [vmem:[%s2 + $0x80] sm:$0xf]
  %v2141 = vld [vmem:[%s2 + $0x84] sm:$0xf]
  %v2142 = vld [vmem:[%s2 + $0x88] sm:$0xf]
  %v2143 = vld [vmem:[%s2 + $0x8c] sm:$0xf]
  %v2144 = vunpack.c.l.b16 %v1821
  %v2145 = vunpack.c.l.b16 %v1831
  %v2146 = vunpack.c.l.b16 %v1841
  %v2147 = vunpack.c.l.b16 %v1851
  %v2148 = vunpack.c.l.b16 %v1861
  %v2149 = vunpack.c.l.b16 %v1871
  %v2150 = vunpack.c.l.b16 %v1881
  %v2151 = vunpack.c.l.b16 %v1891
  %v2152 = vunpack.c.l.b16 %v1901
  %v2153 = vunpack.c.l.b16 %v1911
  %v2154 = vunpack.c.l.b16 %v1921
  %v2155 = vunpack.c.l.b16 %v1931
  %v2156 = vunpack.c.l.b16 %v1941
  %v2157 = vunpack.c.l.b16 %v1951
  %v2158 = vunpack.c.l.b16 %v1961
  %v2159 = vunpack.c.l.b16 %v1971
  %v2160 = vunpack.c.l.b16 %v1985
  %v2161 = vunpack.c.l.b16 %v1995
  %v2162 = vunpack.c.l.b16 %v2005
  %v2163 = vunpack.c.l.b16 %v2015
  %v2164 = vunpack.c.l.b16 %v2025
  %v2165 = vunpack.c.l.b16 %v2035
  %v2166 = vunpack.c.l.b16 %v2045
  %v2167 = vunpack.c.l.b16 %v2055
  %v2168 = vunpack.c.l.b16 %v2065
  %v2169 = vunpack.c.l.b16 %v2075
  %v2170 = vunpack.c.l.b16 %v2085
  %v2171 = vunpack.c.l.b16 %v2095
  %v2172 = vunpack.c.l.b16 %v2105
  %v2173 = vunpack.c.l.b16 %v2115
  %v2174 = vunpack.c.l.b16 %v2125
  %v2175 = vunpack.c.l.b16 %v2135
  %v2176 = vpack.c.b16 %v2145, %v2144
  %v2177 = vpack.c.b16 %v2147, %v2146
  %v2178 = vpack.c.b16 %v2149, %v2148
  %v2179 = vpack.c.b16 %v2151, %v2150
  %v2180 = vpack.c.b16 %v2153, %v2152
  %v2181 = vpack.c.b16 %v2155, %v2154
  %v2182 = vpack.c.b16 %v2157, %v2156
  %v2183 = vpack.c.b16 %v2159, %v2158
  %v2184 = vpack.c.b16 %v2161, %v2160
  %v2185 = vpack.c.b16 %v2163, %v2162
  %v2186 = vpack.c.b16 %v2165, %v2164
  %v2187 = vpack.c.b16 %v2167, %v2166
  %v2188 = vpack.c.b16 %v2169, %v2168
  %v2189 = vpack.c.b16 %v2171, %v2170
  %v2190 = vpack.c.b16 %v2173, %v2172
  %v2191 = vpack.c.b16 %v2175, %v2174
  %v2200 = vunpack.c.l.b16 %v2136
  %v2201 = vunpack.c.l.b16 %v2137
  %v2202 = vunpack.c.l.b16 %v2138
  %v2203 = vunpack.c.l.b16 %v2139
  %v2204 = vunpack.c.l.b16 %v2140
  %v2205 = vunpack.c.l.b16 %v2141
  %v2206 = vunpack.c.l.b16 %v2142
  %v2207 = vunpack.c.l.b16 %v2143
  %v2208 = vpack.c.b16 %v2201, %v2200
  %v2209 = vpack.c.b16 %v2203, %v2202
  %v2210 = vpack.c.b16 %v2205, %v2204
  %v2211 = vpack.c.b16 %v2207, %v2206
  %v2217 = vsel %vm1082, %v2176, 0
  %v2220 = vsel %vm1082, %v2177, 0
  %v2223 = vsel %vm1082, %v2178, 0
  %v2226 = vsel %vm1082, %v2179, 0
  %v2229 = vsel %vm1082, %v2180, 0
  %v2232 = vsel %vm1082, %v2181, 0
  %v2235 = vsel %vm1082, %v2182, 0
  %v2238 = vsel %vm1082, %v2183, 0
  %v2241 = vsel %vm1082, %v2184, 0
  %v2244 = vsel %vm1082, %v2185, 0
  %v2247 = vsel %vm1082, %v2186, 0
  %v2250 = vsel %vm1082, %v2187, 0
  %v2253 = vsel %vm1082, %v2188, 0
  %v2256 = vsel %vm1082, %v2189, 0
  %v2259 = vsel %vm1082, %v2190, 0
  %v2262 = vsel %vm1082, %v2191, 0
  %2264 = vmatpush.bf16.msra.mxu0 0
  %2265 = vmatpush.bf16.msra.mxu0 0
  %2266 = vmatpush.bf16.msra.mxu0 0
  %2267 = vmatpush.bf16.msra.mxu0 0
  %2268 = vmatpush.bf16.msra.mxu0 %v2211
  %2269 = vmatpush.bf16.msra.mxu0 %v2210
  %2270 = vmatpush.bf16.msra.mxu0 %v2209
  %2271 = vmatpush.bf16.msra.mxu0 %v2208
  %2272 = vmatmul.bf16.gmra.mxu0 %v2217
  %v2273 = vpop.f32.mrf.mxu0
  %v2274 = vadd.f32 0.0, %v2273
  %v2275 = vpop.f32.mrf.mxu0
  %v2276 = vadd.f32 0.0, %v2275
  %2277 = vmatmul.bf16.gmra.mxu0 %v2220
  %v2278 = vpop.f32.mrf.mxu0
  %v2279 = vadd.f32 0.0, %v2278
  %v2280 = vpop.f32.mrf.mxu0
  %v2281 = vadd.f32 0.0, %v2280
  %2282 = vmatmul.bf16.gmra.mxu0 %v2223
  %v2283 = vpop.f32.mrf.mxu0
  %v2284 = vadd.f32 0.0, %v2283
  %v2285 = vpop.f32.mrf.mxu0
  %v2286 = vadd.f32 0.0, %v2285
  %2287 = vmatmul.bf16.gmra.mxu0 %v2226
  %v2288 = vpop.f32.mrf.mxu0
  %v2289 = vadd.f32 0.0, %v2288
  %v2290 = vpop.f32.mrf.mxu0
  %v2291 = vadd.f32 0.0, %v2290
  %2292 = vmatmul.bf16.gmra.mxu0 %v2229
  %v2293 = vpop.f32.mrf.mxu0
  %v2294 = vadd.f32 0.0, %v2293
  %v2295 = vpop.f32.mrf.mxu0
  %v2296 = vadd.f32 0.0, %v2295
  %2297 = vmatmul.bf16.gmra.mxu0 %v2232
  %v2298 = vpop.f32.mrf.mxu0
  %v2299 = vadd.f32 0.0, %v2298
  %v2300 = vpop.f32.mrf.mxu0
  %v2301 = vadd.f32 0.0, %v2300
  %2302 = vmatmul.bf16.gmra.mxu0 %v2235
  %v2303 = vpop.f32.mrf.mxu0
  %v2304 = vadd.f32 0.0, %v2303
  %v2305 = vpop.f32.mrf.mxu0
  %v2306 = vadd.f32 0.0, %v2305
  %2307 = vmatmul.bf16.gmra.mxu0 %v2238
  %v2308 = vpop.f32.mrf.mxu0
  %v2309 = vadd.f32 0.0, %v2308
  %v2310 = vpop.f32.mrf.mxu0
  %v2311 = vadd.f32 0.0, %v2310
  %2312 = vmatmul.bf16.gmra.mxu0 %v2241
  %v2313 = vpop.f32.mrf.mxu0
  %v2314 = vadd.f32 0.0, %v2313
  %v2315 = vpop.f32.mrf.mxu0
  %v2316 = vadd.f32 0.0, %v2315
  %2317 = vmatmul.bf16.gmra.mxu0 %v2244
  %v2318 = vpop.f32.mrf.mxu0
  %v2319 = vadd.f32 0.0, %v2318
  %v2320 = vpop.f32.mrf.mxu0
  %v2321 = vadd.f32 0.0, %v2320
  %2322 = vmatmul.bf16.gmra.mxu0 %v2247
  %v2323 = vpop.f32.mrf.mxu0
  %v2324 = vadd.f32 0.0, %v2323
  %v2325 = vpop.f32.mrf.mxu0
  %v2326 = vadd.f32 0.0, %v2325
  %2327 = vmatmul.bf16.gmra.mxu0 %v2250
  %v2328 = vpop.f32.mrf.mxu0
  %v2329 = vadd.f32 0.0, %v2328
  %v2330 = vpop.f32.mrf.mxu0
  %v2331 = vadd.f32 0.0, %v2330
  %2332 = vmatmul.bf16.gmra.mxu0 %v2253
  %v2333 = vpop.f32.mrf.mxu0
  %v2334 = vadd.f32 0.0, %v2333
  %v2335 = vpop.f32.mrf.mxu0
  %v2336 = vadd.f32 0.0, %v2335
  %2337 = vmatmul.bf16.gmra.mxu0 %v2256
  %v2338 = vpop.f32.mrf.mxu0
  %v2339 = vadd.f32 0.0, %v2338
  %v2340 = vpop.f32.mrf.mxu0
  %v2341 = vadd.f32 0.0, %v2340
  %2342 = vmatmul.bf16.gmra.mxu0 %v2259
  %v2343 = vpop.f32.mrf.mxu0
  %v2344 = vadd.f32 0.0, %v2343
  %v2345 = vpop.f32.mrf.mxu0
  %v2346 = vadd.f32 0.0, %v2345
  %2347 = vmatmul.bf16.gmra.mxu0 %v2262
  %v2348 = vpop.f32.mrf.mxu0
  %v2349 = vadd.f32 0.0, %v2348
  %v2350 = vpop.f32.mrf.mxu0
  %v2351 = vadd.f32 0.0, %v2350
  %2352 = vdwg.mxu0
  %v2353 = vadd.f32 %v1742, %v2274
  %v2354 = vadd.f32 %v1743, %v2276
  %v2355 = vadd.f32 %v1744, %v2279
  %v2356 = vadd.f32 %v1745, %v2281
  %v2357 = vadd.f32 %v1746, %v2284
  %v2358 = vadd.f32 %v1747, %v2286
  %v2359 = vadd.f32 %v1748, %v2289
  %v2360 = vadd.f32 %v1749, %v2291
  %v2361 = vadd.f32 %v1750, %v2294
  %v2362 = vadd.f32 %v1751, %v2296
  %v2363 = vadd.f32 %v1752, %v2299
  %v2364 = vadd.f32 %v1753, %v2301
  %v2365 = vadd.f32 %v1754, %v2304
  %v2366 = vadd.f32 %v1755, %v2306
  %v2367 = vadd.f32 %v1756, %v2309
  %v2368 = vadd.f32 %v1757, %v2311
  %v2369 = vadd.f32 %v1758, %v2314
  %v2370 = vadd.f32 %v1759, %v2316
  %v2371 = vadd.f32 %v1760, %v2319
  %v2372 = vadd.f32 %v1761, %v2321
  %v2373 = vadd.f32 %v1762, %v2324
  %v2374 = vadd.f32 %v1763, %v2326
  %v2375 = vadd.f32 %v1764, %v2329
  %v2376 = vadd.f32 %v1765, %v2331
  %v2377 = vadd.f32 %v1766, %v2334
  %v2378 = vadd.f32 %v1767, %v2336
  %v2379 = vadd.f32 %v1768, %v2339
  %v2380 = vadd.f32 %v1769, %v2341
  %v2381 = vadd.f32 %v1770, %v2344
  %v2382 = vadd.f32 %v1771, %v2346
  %v2383 = vadd.f32 %v1772, %v2349
  %v2384 = vadd.f32 %v1773, %v2351
  %v2385 = vld [vmem:[%s3 + $0x2] sm:$0x1]
  %v2386 = vperm.slane %v2385, 0
  %v2387 = vmul.f32 %v2353, %v2386
  %v2388 = vmul.f32 %v2354, %v2386
  %v2389 = vmul.f32 %v2355, %v2386
  %v2390 = vmul.f32 %v2356, %v2386
  %v2391 = vmul.f32 %v2357, %v2386
  %v2392 = vmul.f32 %v2358, %v2386
  %v2393 = vmul.f32 %v2359, %v2386
  %v2394 = vmul.f32 %v2360, %v2386
  %v2395 = vmul.f32 %v2361, %v2386
  %v2396 = vmul.f32 %v2362, %v2386
  %v2397 = vmul.f32 %v2363, %v2386
  %v2398 = vmul.f32 %v2364, %v2386
  %v2399 = vmul.f32 %v2365, %v2386
  %v2400 = vmul.f32 %v2366, %v2386
  %v2401 = vmul.f32 %v2367, %v2386
  %v2402 = vmul.f32 %v2368, %v2386
  %v2403 = vmul.f32 %v2369, %v2386
  %v2404 = vmul.f32 %v2370, %v2386
  %v2405 = vmul.f32 %v2371, %v2386
  %v2406 = vmul.f32 %v2372, %v2386
  %v2407 = vmul.f32 %v2373, %v2386
  %v2408 = vmul.f32 %v2374, %v2386
  %v2409 = vmul.f32 %v2375, %v2386
  %v2410 = vmul.f32 %v2376, %v2386
  %v2411 = vmul.f32 %v2377, %v2386
  %v2412 = vmul.f32 %v2378, %v2386
  %v2413 = vmul.f32 %v2379, %v2386
  %v2414 = vmul.f32 %v2380, %v2386
  %v2415 = vmul.f32 %v2381, %v2386
  %v2416 = vmul.f32 %v2382, %v2386
  %v2417 = vmul.f32 %v2383, %v2386
  %v2418 = vmul.f32 %v2384, %v2386
  %v2419 = vld [vmem:[%s3 + $0x3] sm:$0x1]
  %v2420 = vperm.slane %v2419, 0
  %v2421 = vadd.f32 %v2387, %v2420
  %v2422 = vadd.f32 %v2388, %v2420
  %v2423 = vadd.f32 %v2389, %v2420
  %v2424 = vadd.f32 %v2390, %v2420
  %v2425 = vadd.f32 %v2391, %v2420
  %v2426 = vadd.f32 %v2392, %v2420
  %v2427 = vadd.f32 %v2393, %v2420
  %v2428 = vadd.f32 %v2394, %v2420
  %v2429 = vadd.f32 %v2395, %v2420
  %v2430 = vadd.f32 %v2396, %v2420
  %v2431 = vadd.f32 %v2397, %v2420
  %v2432 = vadd.f32 %v2398, %v2420
  %v2433 = vadd.f32 %v2399, %v2420
  %v2434 = vadd.f32 %v2400, %v2420
  %v2435 = vadd.f32 %v2401, %v2420
  %v2436 = vadd.f32 %v2402, %v2420
  %v2437 = vadd.f32 %v2403, %v2420
  %v2438 = vadd.f32 %v2404, %v2420
  %v2439 = vadd.f32 %v2405, %v2420
  %v2440 = vadd.f32 %v2406, %v2420
  %v2441 = vadd.f32 %v2407, %v2420
  %v2442 = vadd.f32 %v2408, %v2420
  %v2443 = vadd.f32 %v2409, %v2420
  %v2444 = vadd.f32 %v2410, %v2420
  %v2445 = vadd.f32 %v2411, %v2420
  %v2446 = vadd.f32 %v2412, %v2420
  %v2447 = vadd.f32 %v2413, %v2420
  %v2448 = vadd.f32 %v2414, %v2420
  %v2449 = vadd.f32 %v2415, %v2420
  %v2450 = vadd.f32 %v2416, %v2420
  %v2451 = vadd.f32 %v2417, %v2420
  %v2452 = vadd.f32 %v2418, %v2420
  %v2453 = vmax.f32 %v2421, 0.0
  %v2454 = vmax.f32 %v2422, 0.0
  %v2455 = vmax.f32 %v2423, 0.0
  %v2456 = vmax.f32 %v2424, 0.0
  %v2457 = vmax.f32 %v2425, 0.0
  %v2458 = vmax.f32 %v2426, 0.0
  %v2459 = vmax.f32 %v2427, 0.0
  %v2460 = vmax.f32 %v2428, 0.0
  %v2461 = vmax.f32 %v2429, 0.0
  %v2462 = vmax.f32 %v2430, 0.0
  %v2463 = vmax.f32 %v2431, 0.0
  %v2464 = vmax.f32 %v2432, 0.0
  %v2465 = vmax.f32 %v2433, 0.0
  %v2466 = vmax.f32 %v2434, 0.0
  %v2467 = vmax.f32 %v2435, 0.0
  %v2468 = vmax.f32 %v2436, 0.0
  %v2469 = vmax.f32 %v2437, 0.0
  %v2470 = vmax.f32 %v2438, 0.0
  %v2471 = vmax.f32 %v2439, 0.0
  %v2472 = vmax.f32 %v2440, 0.0
  %v2473 = vmax.f32 %v2441, 0.0
  %v2474 = vmax.f32 %v2442, 0.0
  %v2475 = vmax.f32 %v2443, 0.0
  %v2476 = vmax.f32 %v2444, 0.0
  %v2477 = vmax.f32 %v2445, 0.0
  %v2478 = vmax.f32 %v2446, 0.0
  %v2479 = vmax.f32 %v2447, 0.0
  %v2480 = vmax.f32 %v2448, 0.0
  %v2481 = vmax.f32 %v2449, 0.0
  %v2482 = vmax.f32 %v2450, 0.0
  %v2483 = vmax.f32 %v2451, 0.0
  %v2484 = vmax.f32 %v2452, 0.0
  %v2485 = vld [vmem:[%s1 + $0x50] sm:$0xf]
  %v2486 = vld [vmem:[%s1 + $0x54] sm:$0xf]
  %v2487 = vld [vmem:[%s1 + $0x58] sm:$0xf]
  %v2488 = vld [vmem:[%s1 + $0x5c] sm:$0xf]
  %v2489 = vld [vmem:[%s1 + $0x60] sm:$0xf]
  %v2490 = vld [vmem:[%s1 + $0x64] sm:$0xf]
  %v2491 = vld [vmem:[%s1 + $0x68] sm:$0xf]
  %v2492 = vld [vmem:[%s1 + $0x6c] sm:$0xf]
  %v2493 = vld [vmem:[%s1 + $0x70] sm:$0xf]
  %v2494 = vld [vmem:[%s1 + $0x74] sm:$0xf]
  %v2495 = vld [vmem:[%s1 + $0x78] sm:$0xf]
  %v2496 = vld [vmem:[%s1 + $0x7c] sm:$0xf]
  %v2497 = vld [vmem:[%s1 + $0x80] sm:$0xf]
  %v2498 = vld [vmem:[%s1 + $0x84] sm:$0xf]
  %v2499 = vld [vmem:[%s1 + $0x88] sm:$0xf]
  %v2500 = vld [vmem:[%s1 + $0x8c] sm:$0xf]
  %v2501 = vunpack.c.l.bf16 %v2485
  %v2502 = vunpack.c.l.bf16 %v2486
  %v2503 = vunpack.c.l.bf16 %v2487
  %v2504 = vunpack.c.l.bf16 %v2488
  %v2505 = vunpack.c.l.bf16 %v2489
  %v2506 = vunpack.c.l.bf16 %v2490
  %v2507 = vunpack.c.l.bf16 %v2491
  %v2508 = vunpack.c.l.bf16 %v2492
  %v2509 = vunpack.c.l.bf16 %v2493
  %v2510 = vunpack.c.l.bf16 %v2494
  %v2511 = vunpack.c.l.bf16 %v2495
  %v2512 = vunpack.c.l.bf16 %v2496
  %v2513 = vunpack.c.l.bf16 %v2497
  %v2514 = vunpack.c.l.bf16 %v2498
  %v2515 = vunpack.c.l.bf16 %v2499
  %v2516 = vunpack.c.l.bf16 %v2500
  %v2517 = vmul.f32 %v2501, 0.015625
  %v2518 = vmul.f32 %v2502, 0.015625
  %v2519 = vmul.f32 %v2503, 0.015625
  %v2520 = vmul.f32 %v2504, 0.015625
  %v2521 = vmul.f32 %v2505, 0.015625
  %v2522 = vmul.f32 %v2506, 0.015625
  %v2523 = vmul.f32 %v2507, 0.015625
  %v2524 = vmul.f32 %v2508, 0.015625
  %v2525 = vmul.f32 %v2509, 0.015625
  %v2526 = vmul.f32 %v2510, 0.015625
  %v2527 = vmul.f32 %v2511, 0.015625
  %v2528 = vmul.f32 %v2512, 0.015625
  %v2529 = vmul.f32 %v2513, 0.015625
  %v2530 = vmul.f32 %v2514, 0.015625
  %v2531 = vmul.f32 %v2515, 0.015625
  %v2532 = vmul.f32 %v2516, 0.015625
  %v2533 = vmul.f32 %v2453, %v2517
  %v2534 = vmul.f32 %v2454, %v2518
  %v2535 = vmul.f32 %v2455, %v2519
  %v2536 = vmul.f32 %v2456, %v2520
  %v2537 = vmul.f32 %v2457, %v2521
  %v2538 = vmul.f32 %v2458, %v2522
  %v2539 = vmul.f32 %v2459, %v2523
  %v2540 = vmul.f32 %v2460, %v2524
  %v2541 = vmul.f32 %v2461, %v2525
  %v2542 = vmul.f32 %v2462, %v2526
  %v2543 = vmul.f32 %v2463, %v2527
  %v2544 = vmul.f32 %v2464, %v2528
  %v2545 = vmul.f32 %v2465, %v2529
  %v2546 = vmul.f32 %v2466, %v2530
  %v2547 = vmul.f32 %v2467, %v2531
  %v2548 = vmul.f32 %v2468, %v2532
  %v2549 = vmul.f32 %v2469, %v2517
  %v2550 = vmul.f32 %v2470, %v2518
  %v2551 = vmul.f32 %v2471, %v2519
  %v2552 = vmul.f32 %v2472, %v2520
  %v2553 = vmul.f32 %v2473, %v2521
  %v2554 = vmul.f32 %v2474, %v2522
  %v2555 = vmul.f32 %v2475, %v2523
  %v2556 = vmul.f32 %v2476, %v2524
  %v2557 = vmul.f32 %v2477, %v2525
  %v2558 = vmul.f32 %v2478, %v2526
  %v2559 = vmul.f32 %v2479, %v2527
  %v2560 = vmul.f32 %v2480, %v2528
  %v2561 = vmul.f32 %v2481, %v2529
  %v2562 = vmul.f32 %v2482, %v2530
  %v2563 = vmul.f32 %v2483, %v2531
  %v2564 = vmul.f32 %v2484, %v2532
  %vm2565 = vcmask 130048
  %v2566 = vsel %vm2565, %v2533, 0.0
  %v2567 = vsel %vm2565, %v2534, 0.0
  %v2568 = vadd.f32 %v2566, %v2567
  %v2569 = vsel %vm2565, %v2535, 0.0
  %v2570 = vadd.f32 %v2568, %v2569
  %v2571 = vsel %vm2565, %v2536, 0.0
  %v2572 = vadd.f32 %v2570, %v2571
  %v2573 = vsel %vm2565, %v2537, 0.0
  %v2574 = vadd.f32 %v2572, %v2573
  %v2575 = vsel %vm2565, %v2538, 0.0
  %v2576 = vadd.f32 %v2574, %v2575
  %v2577 = vsel %vm2565, %v2539, 0.0
  %v2578 = vadd.f32 %v2576, %v2577
  %v2579 = vsel %vm2565, %v2540, 0.0
  %v2580 = vadd.f32 %v2578, %v2579
  %v2581 = vsel %vm2565, %v2541, 0.0
  %v2582 = vadd.f32 %v2580, %v2581
  %v2583 = vsel %vm2565, %v2542, 0.0
  %v2584 = vadd.f32 %v2582, %v2583
  %v2585 = vsel %vm2565, %v2543, 0.0
  %v2586 = vadd.f32 %v2584, %v2585
  %v2587 = vsel %vm2565, %v2544, 0.0
  %v2588 = vadd.f32 %v2586, %v2587
  %v2589 = vsel %vm2565, %v2545, 0.0
  %v2590 = vadd.f32 %v2588, %v2589
  %v2591 = vsel %vm2565, %v2546, 0.0
  %v2592 = vadd.f32 %v2590, %v2591
  %v2593 = vsel %vm2565, %v2547, 0.0
  %v2594 = vadd.f32 %v2592, %v2593
  %v2595 = vsel %vm2565, %v2548, 0.0
  %v2596 = vadd.f32 %v2594, %v2595
  %v2597 = vrot.slane %v2596, 4
  %v2598 = vadd.f32 %v2596, %v2597
  %v2599 = vrot.slane %v2598, 2
  %v2600 = vadd.f32 %v2598, %v2599
  %v2601 = vrot.slane %v2600, 1
  %v2602 = vadd.f32 %v2600, %v2601
  %v2603 = vsel %vm2565, %v2549, 0.0
  %v2604 = vsel %vm2565, %v2550, 0.0
  %v2605 = vadd.f32 %v2603, %v2604
  %v2606 = vsel %vm2565, %v2551, 0.0
  %v2607 = vadd.f32 %v2605, %v2606
  %v2608 = vsel %vm2565, %v2552, 0.0
  %v2609 = vadd.f32 %v2607, %v2608
  %v2610 = vsel %vm2565, %v2553, 0.0
  %v2611 = vadd.f32 %v2609, %v2610
  %v2612 = vsel %vm2565, %v2554, 0.0
  %v2613 = vadd.f32 %v2611, %v2612
  %v2614 = vsel %vm2565, %v2555, 0.0
  %v2615 = vadd.f32 %v2613, %v2614
  %v2616 = vsel %vm2565, %v2556, 0.0
  %v2617 = vadd.f32 %v2615, %v2616
  %v2618 = vsel %vm2565, %v2557, 0.0
  %v2619 = vadd.f32 %v2617, %v2618
  %v2620 = vsel %vm2565, %v2558, 0.0
  %v2621 = vadd.f32 %v2619, %v2620
  %v2622 = vsel %vm2565, %v2559, 0.0
  %v2623 = vadd.f32 %v2621, %v2622
  %v2624 = vsel %vm2565, %v2560, 0.0
  %v2625 = vadd.f32 %v2623, %v2624
  %v2626 = vsel %vm2565, %v2561, 0.0
  %v2627 = vadd.f32 %v2625, %v2626
  %v2628 = vsel %vm2565, %v2562, 0.0
  %v2629 = vadd.f32 %v2627, %v2628
  %v2630 = vsel %vm2565, %v2563, 0.0
  %v2631 = vadd.f32 %v2629, %v2630
  %v2632 = vsel %vm2565, %v2564, 0.0
  %v2633 = vadd.f32 %v2631, %v2632
  %v2634 = vrot.slane %v2633, 4
  %v2635 = vadd.f32 %v2633, %v2634
  %v2636 = vrot.slane %v2635, 2
  %v2637 = vadd.f32 %v2635, %v2636
  %v2638 = vrot.slane %v2637, 1
  %v2639 = vadd.f32 %v2637, %v2638
  %v2640 = vpack.c.bf16 %v2602, %v2602
  %v2641 = vpack.c.bf16 %v2639, %v2639
  %v2642 = vld [vmem:[%s2 + $0x98] sm:$0xf]
  %v2643 = vld [vmem:[%s2 + $0x9c] sm:$0xf]
  %v2644 = vld [vmem:[%s3 + $0x6] sm:$0x1]
  %v2645 = vperm.slane %v2644, 0
  %v2648 = vunpack.c.l.b16 %v2640
  %v2649 = vunpack.c.l.b16 %v2641
  %vm2650 = vcmask 1041409
  %v2651 = vsel %vm2650, %v2649, %v2648
  %v2652 = vpack.c.b16 %v2651, %v2651
  %v2655 = vunpack.c.l.b16 %v2642
  %v2656 = vunpack.c.l.b16 %v2643
  %v2657 = vpack.c.b16 %v2656, %v2655
  %v2660 = vsel %vm2565, %v2652, 0
  %2662 = vmatpush.bf16.msra.mxu0 0
  %2663 = vmatpush.bf16.msra.mxu0 0
  %2664 = vmatpush.bf16.msra.mxu0 0
  %2665 = vmatpush.bf16.msra.mxu0 0
  %2666 = vmatpush.bf16.msra.mxu0 0
  %2667 = vmatpush.bf16.msra.mxu0 0
  %2668 = vmatpush.bf16.msra.mxu0 0
  %2669 = vmatpush.bf16.msra.mxu0 %v2657
  %2670 = vmatmul.bf16.gmra.mxu0 %v2660
  %v2671 = vpop.f32.mrf.mxu0
  %v2672 = vadd.f32 %v2645, %v2671
  %v2673 = vpop.f32.mrf.mxu0
  %2674 = vdwg.mxu0
  %v2675 = vmax.f32 %v2672, 0.0
  %v2676 = vpack.c.bf16 %v2675, %v2675
  %v2677 = vld [vmem:[%s2 + $0xa0] sm:$0xf]
  %v2678 = vld [vmem:[%s3 + $0x7] sm:$0x1]
  %v2679 = vperm.slane %v2678, 0
  %vm2680 = vcmask 64512
  %v2682 = vsel %vm2680, %v2676, 0
  %vm2684 = vcmask 1043456
  %v2686 = vsel %vm2684, %v2677, 0
  %2688 = vmatpush.bf16.msra.mxu0 0
  %2689 = vmatpush.bf16.msra.mxu0 0
  %2690 = vmatpush.bf16.msra.mxu0 0
  %2691 = vmatpush.bf16.msra.mxu0 0
  %2692 = vmatpush.bf16.msra.mxu0 0
  %2693 = vmatpush.bf16.msra.mxu0 0
  %2694 = vmatpush.bf16.msra.mxu0 0
  %2695 = vmatpush.bf16.msra.mxu0 %v2686
  %2696 = vmatmul.bf16.gmra.mxu0 %v2682
  %v2697 = vpop.f32.mrf.mxu0
  %v2698 = vadd.f32 %v2679, %v2697
  %v2699 = vpop.f32.mrf.mxu0
  %2700 = vdwg.mxu0
  %v2701 = vxor.u32 %v2698, 2147483648
  %v2702 = vmul.f32 %v2701, 1.442695
  %v2703 = vpow.pop %v2702
  %v2704 = vadd.f32 %v2703, 1.0
  %v2705 = vrcp.pop %v2704
  %v2706 = vmul.f32 %v2704, %v2705
  %v2707 = vsub.f32 1.0, %v2706
  %v2708 = vmul.f32 %v2705, %v2707
  %v2709 = vadd.f32 %v2705, %v2708
  %vm2710 = vweird.f32 %v2704
  %vm2711 = vweird.f32 %v2705
  %vm2712 = vmor %vm2710, %vm2711
  %v2713 = vsel %vm2712, %v2705, %v2709
  %v2714 = vand.u32 2147483647, %v2704
  %vm2715 = vcmp.eq.f32.partialorder %v2714, 8.507059e+37
  %v2716 = vand.u32 %v2704, 2147483648
  %v2717 = vor.u32 1.1754944e-38, %v2716
  %v2718 = vsel %vm2715, %v2717, %v2713
  %v2719 = vmul.f32 1.0, %v2718
  %v2721 = vrot.slane %v2719, 1
  %v2722 = vperm.slane %v2719, 0
  %v2723 = vperm.slane %v2721, 0
  %v2726 = vmul.f32 %v2453, %v2722
  %v2727 = vmul.f32 %v2454, %v2722
  %v2728 = vmul.f32 %v2455, %v2722
  %v2729 = vmul.f32 %v2456, %v2722
  %v2730 = vmul.f32 %v2457, %v2722
  %v2731 = vmul.f32 %v2458, %v2722
  %v2732 = vmul.f32 %v2459, %v2722
  %v2733 = vmul.f32 %v2460, %v2722
  %v2734 = vmul.f32 %v2461, %v2722
  %v2735 = vmul.f32 %v2462, %v2722
  %v2736 = vmul.f32 %v2463, %v2722
  %v2737 = vmul.f32 %v2464, %v2722
  %v2738 = vmul.f32 %v2465, %v2722
  %v2739 = vmul.f32 %v2466, %v2722
  %v2740 = vmul.f32 %v2467, %v2722
  %v2741 = vmul.f32 %v2468, %v2722
  %v2742 = vmul.f32 %v2469, %v2723
  %v2743 = vmul.f32 %v2470, %v2723
  %v2744 = vmul.f32 %v2471, %v2723
  %v2745 = vmul.f32 %v2472, %v2723
  %v2746 = vmul.f32 %v2473, %v2723
  %v2747 = vmul.f32 %v2474, %v2723
  %v2748 = vmul.f32 %v2475, %v2723
  %v2749 = vmul.f32 %v2476, %v2723
  %v2750 = vmul.f32 %v2477, %v2723
  %v2751 = vmul.f32 %v2478, %v2723
  %v2752 = vmul.f32 %v2479, %v2723
  %v2753 = vmul.f32 %v2480, %v2723
  %v2754 = vmul.f32 %v2481, %v2723
  %v2755 = vmul.f32 %v2482, %v2723
  %v2756 = vmul.f32 %v2483, %v2723
  %v2757 = vmul.f32 %v2484, %v2723
  %v2758 = vpack.c.bf16 %v2727, %v2726
  %v2759 = vpack.c.bf16 %v2729, %v2728
  %v2760 = vpack.c.bf16 %v2731, %v2730
  %v2761 = vpack.c.bf16 %v2733, %v2732
  %v2762 = vpack.c.bf16 %v2735, %v2734
  %v2763 = vpack.c.bf16 %v2737, %v2736
  %v2764 = vpack.c.bf16 %v2739, %v2738
  %v2765 = vpack.c.bf16 %v2741, %v2740
  %v2766 = vpack.c.bf16 %v2743, %v2742
  %v2767 = vpack.c.bf16 %v2745, %v2744
  %v2768 = vpack.c.bf16 %v2747, %v2746
  %v2769 = vpack.c.bf16 %v2749, %v2748
  %v2770 = vpack.c.bf16 %v2751, %v2750
  %v2771 = vpack.c.bf16 %v2753, %v2752
  %v2772 = vpack.c.bf16 %v2755, %v2754
  %v2773 = vpack.c.bf16 %v2757, %v2756
  %v2774 = vld [vmem:[%s2 + $0x90] sm:$0xf]
  %v2775 = vld [vmem:[%s2 + $0x94] sm:$0xf]
  %v2778 = vunpack.c.l.b16 %v2774
  %v2779 = vunpack.c.l.b16 %v2775
  %v2780 = vpack.c.b16 %v2779, %v2778
  %v2783 = vsel %vm2565, %v2758, 0
  %v2786 = vsel %vm2565, %v2759, 0
  %v2789 = vsel %vm2565, %v2760, 0
  %v2792 = vsel %vm2565, %v2761, 0
  %v2795 = vsel %vm2565, %v2762, 0
  %v2798 = vsel %vm2565, %v2763, 0
  %v2801 = vsel %vm2565, %v2764, 0
  %v2804 = vsel %vm2565, %v2765, 0
  %v2807 = vsel %vm2565, %v2766, 0
  %v2810 = vsel %vm2565, %v2767, 0
  %v2813 = vsel %vm2565, %v2768, 0
  %v2816 = vsel %vm2565, %v2769, 0
  %v2819 = vsel %vm2565, %v2770, 0
  %v2822 = vsel %vm2565, %v2771, 0
  %v2825 = vsel %vm2565, %v2772, 0
  %v2828 = vsel %vm2565, %v2773, 0
  %2830 = vmatpush.bf16.msra.mxu0 0
  %2831 = vmatpush.bf16.msra.mxu0 0
  %2832 = vmatpush.bf16.msra.mxu0 0
  %2833 = vmatpush.bf16.msra.mxu0 0
  %2834 = vmatpush.bf16.msra.mxu0 0
  %2835 = vmatpush.bf16.msra.mxu0 0
  %2836 = vmatpush.bf16.msra.mxu0 0
  %2837 = vmatpush.bf16.msra.mxu0 %v2780
  %2838 = vmatmul.bf16.gmra.mxu0 %v2783
  %v2839 = vpop.f32.mrf.mxu0
  %v2840 = vadd.f32 0.0, %v2839
  %v2841 = vpop.f32.mrf.mxu0
  %v2842 = vadd.f32 0.0, %v2841
  %2843 = vmatmul.bf16.gmra.mxu0 %v2786
  %v2844 = vpop.f32.mrf.mxu0
  %v2845 = vadd.f32 0.0, %v2844
  %v2846 = vpop.f32.mrf.mxu0
  %v2847 = vadd.f32 0.0, %v2846
  %2848 = vmatmul.bf16.gmra.mxu0 %v2789
  %v2849 = vpop.f32.mrf.mxu0
  %v2850 = vadd.f32 0.0, %v2849
  %v2851 = vpop.f32.mrf.mxu0
  %v2852 = vadd.f32 0.0, %v2851
  %2853 = vmatmul.bf16.gmra.mxu0 %v2792
  %v2854 = vpop.f32.mrf.mxu0
  %v2855 = vadd.f32 0.0, %v2854
  %v2856 = vpop.f32.mrf.mxu0
  %v2857 = vadd.f32 0.0, %v2856
  %2858 = vmatmul.bf16.gmra.mxu0 %v2795
  %v2859 = vpop.f32.mrf.mxu0
  %v2860 = vadd.f32 0.0, %v2859
  %v2861 = vpop.f32.mrf.mxu0
  %v2862 = vadd.f32 0.0, %v2861
  %2863 = vmatmul.bf16.gmra.mxu0 %v2798
  %v2864 = vpop.f32.mrf.mxu0
  %v2865 = vadd.f32 0.0, %v2864
  %v2866 = vpop.f32.mrf.mxu0
  %v2867 = vadd.f32 0.0, %v2866
  %2868 = vmatmul.bf16.gmra.mxu0 %v2801
  %v2869 = vpop.f32.mrf.mxu0
  %v2870 = vadd.f32 0.0, %v2869
  %v2871 = vpop.f32.mrf.mxu0
  %v2872 = vadd.f32 0.0, %v2871
  %2873 = vmatmul.bf16.gmra.mxu0 %v2804
  %v2874 = vpop.f32.mrf.mxu0
  %v2875 = vadd.f32 0.0, %v2874
  %v2876 = vpop.f32.mrf.mxu0
  %v2877 = vadd.f32 0.0, %v2876
  %2878 = vmatmul.bf16.gmra.mxu0 %v2807
  %v2879 = vpop.f32.mrf.mxu0
  %v2880 = vadd.f32 0.0, %v2879
  %v2881 = vpop.f32.mrf.mxu0
  %v2882 = vadd.f32 0.0, %v2881
  %2883 = vmatmul.bf16.gmra.mxu0 %v2810
  %v2884 = vpop.f32.mrf.mxu0
  %v2885 = vadd.f32 0.0, %v2884
  %v2886 = vpop.f32.mrf.mxu0
  %v2887 = vadd.f32 0.0, %v2886
  %2888 = vmatmul.bf16.gmra.mxu0 %v2813
  %v2889 = vpop.f32.mrf.mxu0
  %v2890 = vadd.f32 0.0, %v2889
  %v2891 = vpop.f32.mrf.mxu0
  %v2892 = vadd.f32 0.0, %v2891
  %2893 = vmatmul.bf16.gmra.mxu0 %v2816
  %v2894 = vpop.f32.mrf.mxu0
  %v2895 = vadd.f32 0.0, %v2894
  %v2896 = vpop.f32.mrf.mxu0
  %v2897 = vadd.f32 0.0, %v2896
  %2898 = vmatmul.bf16.gmra.mxu0 %v2819
  %v2899 = vpop.f32.mrf.mxu0
  %v2900 = vadd.f32 0.0, %v2899
  %v2901 = vpop.f32.mrf.mxu0
  %v2902 = vadd.f32 0.0, %v2901
  %2903 = vmatmul.bf16.gmra.mxu0 %v2822
  %v2904 = vpop.f32.mrf.mxu0
  %v2905 = vadd.f32 0.0, %v2904
  %v2906 = vpop.f32.mrf.mxu0
  %v2907 = vadd.f32 0.0, %v2906
  %2908 = vmatmul.bf16.gmra.mxu0 %v2825
  %v2909 = vpop.f32.mrf.mxu0
  %v2910 = vadd.f32 0.0, %v2909
  %v2911 = vpop.f32.mrf.mxu0
  %v2912 = vadd.f32 0.0, %v2911
  %2913 = vmatmul.bf16.gmra.mxu0 %v2828
  %v2914 = vpop.f32.mrf.mxu0
  %v2915 = vadd.f32 0.0, %v2914
  %v2916 = vpop.f32.mrf.mxu0
  %v2917 = vadd.f32 0.0, %v2916
  %2918 = vdwg.mxu0
  %v2919 = vld [vmem:[%s3 + $0x4] sm:$0x1]
  %v2920 = vperm.slane %v2919, 0
  %v2921 = vmul.f32 %v2840, %v2920
  %v2922 = vmul.f32 %v2842, %v2920
  %v2923 = vmul.f32 %v2845, %v2920
  %v2924 = vmul.f32 %v2847, %v2920
  %v2925 = vmul.f32 %v2850, %v2920
  %v2926 = vmul.f32 %v2852, %v2920
  %v2927 = vmul.f32 %v2855, %v2920
  %v2928 = vmul.f32 %v2857, %v2920
  %v2929 = vmul.f32 %v2860, %v2920
  %v2930 = vmul.f32 %v2862, %v2920
  %v2931 = vmul.f32 %v2865, %v2920
  %v2932 = vmul.f32 %v2867, %v2920
  %v2933 = vmul.f32 %v2870, %v2920
  %v2934 = vmul.f32 %v2872, %v2920
  %v2935 = vmul.f32 %v2875, %v2920
  %v2936 = vmul.f32 %v2877, %v2920
  %v2937 = vmul.f32 %v2880, %v2920
  %v2938 = vmul.f32 %v2882, %v2920
  %v2939 = vmul.f32 %v2885, %v2920
  %v2940 = vmul.f32 %v2887, %v2920
  %v2941 = vmul.f32 %v2890, %v2920
  %v2942 = vmul.f32 %v2892, %v2920
  %v2943 = vmul.f32 %v2895, %v2920
  %v2944 = vmul.f32 %v2897, %v2920
  %v2945 = vmul.f32 %v2900, %v2920
  %v2946 = vmul.f32 %v2902, %v2920
  %v2947 = vmul.f32 %v2905, %v2920
  %v2948 = vmul.f32 %v2907, %v2920
  %v2949 = vmul.f32 %v2910, %v2920
  %v2950 = vmul.f32 %v2912, %v2920
  %v2951 = vmul.f32 %v2915, %v2920
  %v2952 = vmul.f32 %v2917, %v2920
  %v2953 = vld [vmem:[%s3 + $0x5] sm:$0x1]
  %v2954 = vperm.slane %v2953, 0
  %v2955 = vadd.f32 %v2921, %v2954
  %v2956 = vadd.f32 %v2922, %v2954
  %v2957 = vadd.f32 %v2923, %v2954
  %v2958 = vadd.f32 %v2924, %v2954
  %v2959 = vadd.f32 %v2925, %v2954
  %v2960 = vadd.f32 %v2926, %v2954
  %v2961 = vadd.f32 %v2927, %v2954
  %v2962 = vadd.f32 %v2928, %v2954
  %v2963 = vadd.f32 %v2929, %v2954
  %v2964 = vadd.f32 %v2930, %v2954
  %v2965 = vadd.f32 %v2931, %v2954
  %v2966 = vadd.f32 %v2932, %v2954
  %v2967 = vadd.f32 %v2933, %v2954
  %v2968 = vadd.f32 %v2934, %v2954
  %v2969 = vadd.f32 %v2935, %v2954
  %v2970 = vadd.f32 %v2936, %v2954
  %v2971 = vadd.f32 %v2937, %v2954
  %v2972 = vadd.f32 %v2938, %v2954
  %v2973 = vadd.f32 %v2939, %v2954
  %v2974 = vadd.f32 %v2940, %v2954
  %v2975 = vadd.f32 %v2941, %v2954
  %v2976 = vadd.f32 %v2942, %v2954
  %v2977 = vadd.f32 %v2943, %v2954
  %v2978 = vadd.f32 %v2944, %v2954
  %v2979 = vadd.f32 %v2945, %v2954
  %v2980 = vadd.f32 %v2946, %v2954
  %v2981 = vadd.f32 %v2947, %v2954
  %v2982 = vadd.f32 %v2948, %v2954
  %v2983 = vadd.f32 %v2949, %v2954
  %v2984 = vadd.f32 %v2950, %v2954
  %v2985 = vadd.f32 %v2951, %v2954
  %v2986 = vadd.f32 %v2952, %v2954
  %v2987 = vpack.c.bf16 %v2955, %v2955
  %v2988 = vpack.c.bf16 %v2956, %v2956
  %v2989 = vpack.c.bf16 %v2957, %v2957
  %v2990 = vpack.c.bf16 %v2958, %v2958
  %v2991 = vpack.c.bf16 %v2959, %v2959
  %v2992 = vpack.c.bf16 %v2960, %v2960
  %v2993 = vpack.c.bf16 %v2961, %v2961
  %v2994 = vpack.c.bf16 %v2962, %v2962
  %v2995 = vpack.c.bf16 %v2963, %v2963
  %v2996 = vpack.c.bf16 %v2964, %v2964
  %v2997 = vpack.c.bf16 %v2965, %v2965
  %v2998 = vpack.c.bf16 %v2966, %v2966
  %v2999 = vpack.c.bf16 %v2967, %v2967
  %v3000 = vpack.c.bf16 %v2968, %v2968
  %v3001 = vpack.c.bf16 %v2969, %v2969
  %v3002 = vpack.c.bf16 %v2970, %v2970
  %v3003 = vpack.c.bf16 %v2971, %v2971
  %v3004 = vpack.c.bf16 %v2972, %v2972
  %v3005 = vpack.c.bf16 %v2973, %v2973
  %v3006 = vpack.c.bf16 %v2974, %v2974
  %v3007 = vpack.c.bf16 %v2975, %v2975
  %v3008 = vpack.c.bf16 %v2976, %v2976
  %v3009 = vpack.c.bf16 %v2977, %v2977
  %v3010 = vpack.c.bf16 %v2978, %v2978
  %v3011 = vpack.c.bf16 %v2979, %v2979
  %v3012 = vpack.c.bf16 %v2980, %v2980
  %v3013 = vpack.c.bf16 %v2981, %v2981
  %v3014 = vpack.c.bf16 %v2982, %v2982
  %v3015 = vpack.c.bf16 %v2983, %v2983
  %v3016 = vpack.c.bf16 %v2984, %v2984
  %v3017 = vpack.c.bf16 %v2985, %v2985
  %v3018 = vpack.c.bf16 %v2986, %v2986
  %vm3019 = vcmask 125952
  %3020 = vst.msk [vmem:[%s4] sm:$0xf] %vm3019, %v2987
  %3021 = vst.msk [vmem:[%s4 + $0x4] sm:$0xf] %vm3019, %v2988
  %3022 = vst.msk [vmem:[%s4 + $0x8] sm:$0xf] %vm3019, %v2989
  %3023 = vst.msk [vmem:[%s4 + $0xc] sm:$0xf] %vm3019, %v2990
  %3024 = vst.msk [vmem:[%s4 + $0x10] sm:$0xf] %vm3019, %v2991
  %3025 = vst.msk [vmem:[%s4 + $0x14] sm:$0xf] %vm3019, %v2992
  %3026 = vst.msk [vmem:[%s4 + $0x18] sm:$0xf] %vm3019, %v2993
  %3027 = vst.msk [vmem:[%s4 + $0x1c] sm:$0xf] %vm3019, %v2994
  %3028 = vst.msk [vmem:[%s4 + $0x20] sm:$0xf] %vm3019, %v2995
  %3029 = vst.msk [vmem:[%s4 + $0x24] sm:$0xf] %vm3019, %v2996
  %3030 = vst.msk [vmem:[%s4 + $0x28] sm:$0xf] %vm3019, %v2997
  %3031 = vst.msk [vmem:[%s4 + $0x2c] sm:$0xf] %vm3019, %v2998
  %3032 = vst.msk [vmem:[%s4 + $0x30] sm:$0xf] %vm3019, %v2999
  %3033 = vst.msk [vmem:[%s4 + $0x34] sm:$0xf] %vm3019, %v3000
  %3034 = vst.msk [vmem:[%s4 + $0x38] sm:$0xf] %vm3019, %v3001
  %3035 = vst.msk [vmem:[%s4 + $0x3c] sm:$0xf] %vm3019, %v3002
  %3036 = vst.msk [vmem:[%s4 + $0x40] sm:$0xf] %vm3019, %v3003
  %3037 = vst.msk [vmem:[%s4 + $0x44] sm:$0xf] %vm3019, %v3004
  %3038 = vst.msk [vmem:[%s4 + $0x48] sm:$0xf] %vm3019, %v3005
  %3039 = vst.msk [vmem:[%s4 + $0x4c] sm:$0xf] %vm3019, %v3006
  %3040 = vst.msk [vmem:[%s4 + $0x50] sm:$0xf] %vm3019, %v3007
  %3041 = vst.msk [vmem:[%s4 + $0x54] sm:$0xf] %vm3019, %v3008
  %3042 = vst.msk [vmem:[%s4 + $0x58] sm:$0xf] %vm3019, %v3009
  %3043 = vst.msk [vmem:[%s4 + $0x5c] sm:$0xf] %vm3019, %v3010
  %3044 = vst.msk [vmem:[%s4 + $0x60] sm:$0xf] %vm3019, %v3011
  %3045 = vst.msk [vmem:[%s4 + $0x64] sm:$0xf] %vm3019, %v3012
  %3046 = vst.msk [vmem:[%s4 + $0x68] sm:$0xf] %vm3019, %v3013
  %3047 = vst.msk [vmem:[%s4 + $0x6c] sm:$0xf] %vm3019, %v3014
  %3048 = vst.msk [vmem:[%s4 + $0x70] sm:$0xf] %vm3019, %v3015
  %3049 = vst.msk [vmem:[%s4 + $0x74] sm:$0xf] %vm3019, %v3016
  %3050 = vst.msk [vmem:[%s4 + $0x78] sm:$0xf] %vm3019, %v3017
  %3051 = vst.msk [vmem:[%s4 + $0x7c] sm:$0xf] %vm3019, %v3018
  // Predicated region
  $region18: #{bottleneck_transform_forward.1} parent=0 // pred_check
    _
  $region19: #{bottleneck_transform_forward.1} parent=0 // pred_check_branch
    %3053 = sbr.rel (0) target = $region21
  $region20: #{bottleneck_transform_forward.1} parent=0 // pred_region
    _
  $region21: #{bottleneck_transform_forward.1} parent=0 // pred_fallthru
    _
  // Predicated region
  $region22: #{bottleneck_transform_forward.1} parent=0 // pred_check
    _
  $region23: #{bottleneck_transform_forward.1} parent=0 // pred_check_branch
    %3055 = sbr.rel (0) target = $region25
  $region24: #{bottleneck_transform_forward.1} parent=0 // pred_region
    _
  $region25: #{bottleneck_transform_forward.1} parent=0 // pred_fallthru
    _

</llo_original>
